<compile_context>
chip_gen: v5e
topology: v5e:2x2
jax: 0.10.0
libtpu: 0.0.40
codegen_flags: <defaults>
</compile_context>

<pallas_src>
import functools

import jax
import jax.numpy as jnp
from jax.experimental import pallas as pl
from jax.experimental.pallas import tpu as pltpu


def _softmax_last(z):
    z = z - jnp.max(z, axis=-1, keepdims=True)
    ez = jnp.exp(z)
    denom = jnp.sum(ez, axis=-1, keepdims=True)
    return ez * pl.reciprocal(denom, approx=True)


def shuffler_kernel(x_ref,
                    wq1_ref, bq1_ref, wk1_ref, bk1_ref, wv1_ref, bv1_ref,
                    wqkv2_ref, bqkv2_ref,
                    o_ref, *, tau, matmul_dtype):
    x = x_ref[...]                       # (TB, N) f32, lane-dense
    tb, n = x.shape
    e = wv1_ref.shape[-1]                # embed = 32
    inv_sqrt_n = 1.0 / (n ** 0.5)        # PyTorch scales by 1/sqrt(K.shape[1]) == 1/sqrt(N)

    # ---- SelfAttention 1 (in_features = 1): rank-1 shortcut, VPU only ----
    wq1 = wq1_ref[...]
    bq1 = bq1_ref[...]
    wk1 = wk1_ref[...]
    bk1 = bk1_ref[...]
    c_qk = jnp.sum(wq1 * wk1)
    c_q = jnp.sum(wq1 * bk1)
    c_k = jnp.sum(bq1 * wk1)
    c_0 = jnp.sum(bq1 * bk1)

    xi = x[:, :, None]                   # (TB, N, 1)
    xj = x[:, None, :]                   # (TB, 1, N)
    s1 = (c_qk * (xi * xj) + c_q * xi + c_k * xj + c_0) * inv_sqrt_n   # (TB, N, N)
    w1 = _softmax_last(s1)
    u = jnp.sum(w1 * xj, axis=-1)        # (TB, N)  == bmm(w1, x)
    # h = attention of layer 1 = u (x) wv1 + bv1  (softmax rows sum to 1)
    h = u[:, :, None] * wv1_ref[...][None] + bv1_ref[...][None]        # (TB, N, 32)

    # ---- SelfAttention 2 (32 -> N): one fused QKV matmul on the MXU ----
    h2 = h.reshape(tb * n, e).astype(matmul_dtype)
    qkv = jnp.dot(h2, wqkv2_ref[...].astype(matmul_dtype),
                  preferred_element_type=jnp.float32) + bqkv2_ref[...]  # (TB*N, 3N)
    qkv = qkv.reshape(tb, n, 3 * n)
    q2 = qkv[:, :, :n].astype(matmul_dtype)
    k2 = qkv[:, :, n:2 * n].astype(matmul_dtype)
    v2 = qkv[:, :, 2 * n:].astype(matmul_dtype)

    # contract on last dims directly (no in-kernel transpose)
    s2 = jnp.einsum('bnk,bmk->bnm', q2, k2,
                    preferred_element_type=jnp.float32) * inv_sqrt_n    # (TB, N, N)
    w2 = _softmax_last(s2)
    a2 = jnp.einsum('bnm,bmk->bnk', w2.astype(matmul_dtype), v2,
                    preferred_element_type=jnp.float32)                 # (TB, N, N)

    # ---- final softmax over last dim of (attention * tau) ----
    out = _softmax_last(a2 * tau)
    o_ref[...] = out.astype(o_ref.dtype)


def shuffler_forward(x, params, tau=1.0, block_b=16, matmul_dtype=jnp.float32):
    """x: (B, N, 1). Returns (B, N, N).  Set matmul_dtype=jnp.bfloat16 on v6e/v7x."""
    B, N, D = x.shape
    assert D == 1, "Shuffler's first attention layer has in_features=1, so D must be 1"
    (wq1, bq1, wk1, bk1, wv1, bv1, wq2, bq2, wk2, bk2, wv2, bv2) = params

    # Fuse layer-2 Q/K/V weights and biases: (32, 3N) and (1, 3N).
    wqkv2 = jnp.concatenate([wq2, wk2, wv2], axis=1)
    bqkv2 = jnp.concatenate([bq2, bk2, bv2], axis=1)

    # Lane-dense input: drop the size-1 feature dim.
    x2d = x.reshape(B, N)

    # Batch tile: largest divisor of B not exceeding block_b.
    tb = max(1, min(block_b, B))
    while B % tb:
        tb -= 1

    kernel = functools.partial(shuffler_kernel, tau=float(tau),
                               matmul_dtype=matmul_dtype)

    def full2d(arr):
        return pl.BlockSpec(arr.shape, lambda b: (0, 0))

    out = pl.pallas_call(
        kernel,
        out_shape=jax.ShapeDtypeStruct((B, N, N), jnp.float32),
        grid=(B // tb,),
        in_specs=[
            pl.BlockSpec((tb, N), lambda b: (b, 0)),
            full2d(wq1), full2d(bq1),
            full2d(wk1), full2d(bk1),
            full2d(wv1), full2d(bv1),
            full2d(wqkv2), full2d(bqkv2),
        ],
        out_specs=pl.BlockSpec((tb, N, N), lambda b: (b, 0, 0)),
        compiler_params=pltpu.CompilerParams(
            dimension_semantics=("parallel",),
            vmem_limit_bytes=32 * 1024 * 1024,
        ),
    )(x2d, wq1, bq1, wk1, bk1, wv1, bv1, wqkv2, bqkv2)
    return out


def init_params(key, N, embed=32):
    """PyTorch-style Linear init (uniform +/- 1/sqrt(fan_in)).
    Weights returned pre-transposed as (in_features, out_features); biases as (1, out)."""
    ks = jax.random.split(key, 12)

    def linear(kw, kb, fan_in, fan_out):
        bound = 1.0 / (fan_in ** 0.5)
        w = jax.random.uniform(kw, (fan_in, fan_out), jnp.float32, -bound, bound)
        b = jax.random.uniform(kb, (1, fan_out), jnp.float32, -bound, bound)
        return w, b

    wq1, bq1 = linear(ks[0], ks[1], 1, embed)
    wk1, bk1 = linear(ks[2], ks[3], 1, embed)
    wv1, bv1 = linear(ks[4], ks[5], 1, embed)
    wq2, bq2 = linear(ks[6], ks[7], embed, N)
    wk2, bk2 = linear(ks[8], ks[9], embed, N)
    wv2, bv2 = linear(ks[10], ks[11], embed, N)
    return (wq1, bq1, wk1, bk1, wv1, bv1, wq2, bq2, wk2, bk2, wv2, bv2)


def _reference_forward(x, params, tau=1.0):
    """Plain-JAX reference mirroring the PyTorch module."""
    (wq1, bq1, wk1, bk1, wv1, bv1, wq2, bq2, wk2, bk2, wv2, bv2) = params
    N = x.shape[1]

    def attn(h, wq, bq, wk, bk, wv, bv):
        Q = h @ wq + bq
        K = h @ wk + bk
        V = h @ wv + bv
        s = jnp.einsum("bnd,bmd->bnm", Q, K) / (K.shape[1] ** 0.5)
        w = jax.nn.softmax(s, axis=-1)
        return jnp.einsum("bnm,bmd->bnd", w, V)

    h = attn(x, wq1, bq1, wk1, bk1, wv1, bv1)
    a = attn(h, wq2, bq2, wk2, bk2, wv2, bv2)
    return jax.nn.softmax(a * tau, axis=-1).reshape(x.shape[0], N, N)


if __name__ == "__main__":
    B, N, D = 32, 8, 1     # sequence of N scalar tokens (in_features=1)
    tau = 1.0

    key = jax.random.PRNGKey(0)
    kx, kp = jax.random.split(key)
    x = jax.random.normal(kx, (B, N, D), jnp.float32)
    params = init_params(kp, N)

    out = shuffler_forward(x, params, tau=tau, block_b=16)
    out = jax.block_until_ready(out)

    ref = _reference_forward(x, params, tau=tau)
    assert out.shape == (B, N, N)
    # Tolerance absorbs the approximate-reciprocal softmax and the rank-1 refactoring
    # of layer 1 (both well below 1e-2 on softmax outputs in [0, 1]).
    assert jnp.allclose(out, ref, atol=1e-2, rtol=1e-2), \
        float(jnp.max(jnp.abs(out - ref)))

    print("KERNEL_OK")
</pallas_src>

<mosaic_0001>
module attributes {stable_mosaic.version = 11 : i64} {
  func.func @shuffler_kernel(%arg0: i32, %arg1: memref<16x8xf32, #tpu.memory_space<vmem>>, %arg2: memref<1x32xf32, #tpu.memory_space<vmem>>, %arg3: memref<1x32xf32, #tpu.memory_space<vmem>>, %arg4: memref<1x32xf32, #tpu.memory_space<vmem>>, %arg5: memref<1x32xf32, #tpu.memory_space<vmem>>, %arg6: memref<1x32xf32, #tpu.memory_space<vmem>>, %arg7: memref<1x32xf32, #tpu.memory_space<vmem>>, %arg8: memref<32x24xf32, #tpu.memory_space<vmem>>, %arg9: memref<1x24xf32, #tpu.memory_space<vmem>>, %arg10: memref<16x8x8xf32, #tpu.memory_space<vmem>>) attributes {dimension_semantics = [#tpu.dimension_semantics<parallel>], iteration_bounds = array<i64: 2>, scalar_prefetch = 0 : i64, scratch_operands = 0 : i64, tpu.core_type = #tpu.core_type<tc>, window_params = [{transform_indices = @transform_0, window_bounds = array<i64: 16, 8>}, {pipeline_mode = #tpu.pipeline_mode<synchronous>, transform_indices = @transform_1, window_bounds = array<i64: 1, 32>}, {pipeline_mode = #tpu.pipeline_mode<synchronous>, transform_indices = @transform_2, window_bounds = array<i64: 1, 32>}, {pipeline_mode = #tpu.pipeline_mode<synchronous>, transform_indices = @transform_3, window_bounds = array<i64: 1, 32>}, {pipeline_mode = #tpu.pipeline_mode<synchronous>, transform_indices = @transform_4, window_bounds = array<i64: 1, 32>}, {pipeline_mode = #tpu.pipeline_mode<synchronous>, transform_indices = @transform_5, window_bounds = array<i64: 1, 32>}, {pipeline_mode = #tpu.pipeline_mode<synchronous>, transform_indices = @transform_6, window_bounds = array<i64: 1, 32>}, {pipeline_mode = #tpu.pipeline_mode<synchronous>, transform_indices = @transform_7, window_bounds = array<i64: 32, 24>}, {pipeline_mode = #tpu.pipeline_mode<synchronous>, transform_indices = @transform_8, window_bounds = array<i64: 1, 24>}, {transform_indices = @transform_9, window_bounds = array<i64: 16, 8, 8>}]} {
    %c0 = arith.constant 0 : index
    %c0_0 = arith.constant 0 : index
    %0 = vector.load %arg1[%c0, %c0_0] : memref<16x8xf32, #tpu.memory_space<vmem>>, vector<16x8xf32>
    %c0_1 = arith.constant 0 : index
    %c0_2 = arith.constant 0 : index
    %1 = vector.load %arg2[%c0_1, %c0_2] : memref<1x32xf32, #tpu.memory_space<vmem>>, vector<1x32xf32>
    %c0_3 = arith.constant 0 : index
    %c0_4 = arith.constant 0 : index
    %2 = vector.load %arg3[%c0_3, %c0_4] : memref<1x32xf32, #tpu.memory_space<vmem>>, vector<1x32xf32>
    %c0_5 = arith.constant 0 : index
    %c0_6 = arith.constant 0 : index
    %3 = vector.load %arg4[%c0_5, %c0_6] : memref<1x32xf32, #tpu.memory_space<vmem>>, vector<1x32xf32>
    %c0_7 = arith.constant 0 : index
    %c0_8 = arith.constant 0 : index
    %4 = vector.load %arg5[%c0_7, %c0_8] : memref<1x32xf32, #tpu.memory_space<vmem>>, vector<1x32xf32>
    %5 = arith.mulf %1, %3 : vector<1x32xf32>
    %6 = vector.shape_cast %5 : vector<1x32xf32> to vector<1x1x32xf32>
    %cst = arith.constant dense<0.000000e+00> : vector<1xf32>
    %7 = vector.multi_reduction <add>, %6, %cst [1, 2] : vector<1x1x32xf32> to vector<1xf32>
    %8 = vector.shape_cast %7 : vector<1xf32> to vector<1x1x1xf32>
    %9 = vector.extract %8[0, 0, 0] : f32 from vector<1x1x1xf32>
    %10 = arith.mulf %1, %4 : vector<1x32xf32>
    %11 = vector.shape_cast %10 : vector<1x32xf32> to vector<1x1x32xf32>
    %cst_9 = arith.constant dense<0.000000e+00> : vector<1xf32>
    %12 = vector.multi_reduction <add>, %11, %cst_9 [1, 2] : vector<1x1x32xf32> to vector<1xf32>
    %13 = vector.shape_cast %12 : vector<1xf32> to vector<1x1x1xf32>
    %14 = vector.extract %13[0, 0, 0] : f32 from vector<1x1x1xf32>
    %15 = arith.mulf %2, %3 : vector<1x32xf32>
    %16 = vector.shape_cast %15 : vector<1x32xf32> to vector<1x1x32xf32>
    %cst_10 = arith.constant dense<0.000000e+00> : vector<1xf32>
    %17 = vector.multi_reduction <add>, %16, %cst_10 [1, 2] : vector<1x1x32xf32> to vector<1xf32>
    %18 = vector.shape_cast %17 : vector<1xf32> to vector<1x1x1xf32>
    %19 = vector.extract %18[0, 0, 0] : f32 from vector<1x1x1xf32>
    %20 = arith.mulf %2, %4 : vector<1x32xf32>
    %21 = vector.shape_cast %20 : vector<1x32xf32> to vector<1x1x32xf32>
    %cst_11 = arith.constant dense<0.000000e+00> : vector<1xf32>
    %22 = vector.multi_reduction <add>, %21, %cst_11 [1, 2] : vector<1x1x32xf32> to vector<1xf32>
    %23 = vector.shape_cast %22 : vector<1xf32> to vector<1x1x1xf32>
    %24 = vector.extract %23[0, 0, 0] : f32 from vector<1x1x1xf32>
    %25 = vector.shape_cast %0 : vector<16x8xf32> to vector<16x8x1xf32>
    %26 = vector.shape_cast %0 : vector<16x8xf32> to vector<16x1x8xf32>
    %27 = vector.broadcast %25 : vector<16x8x1xf32> to vector<16x8x8xf32>
    %28 = vector.broadcast %26 : vector<16x1x8xf32> to vector<16x8x8xf32>
    %29 = arith.mulf %27, %28 : vector<16x8x8xf32>
    %30 = vector.broadcast %9 : f32 to vector<16x8x8xf32>
    %31 = arith.mulf %30, %29 : vector<16x8x8xf32>
    %32 = vector.broadcast %14 : f32 to vector<16x8x1xf32>
    %33 = arith.mulf %32, %25 : vector<16x8x1xf32>
    %34 = vector.broadcast %33 : vector<16x8x1xf32> to vector<16x8x8xf32>
    %35 = arith.addf %31, %34 : vector<16x8x8xf32>
    %36 = vector.broadcast %19 : f32 to vector<16x1x8xf32>
    %37 = arith.mulf %36, %26 : vector<16x1x8xf32>
    %38 = vector.broadcast %37 : vector<16x1x8xf32> to vector<16x8x8xf32>
    %39 = arith.addf %35, %38 : vector<16x8x8xf32>
    %40 = vector.broadcast %24 : f32 to vector<16x8x8xf32>
    %41 = arith.addf %39, %40 : vector<16x8x8xf32>
    %cst_12 = arith.constant 0.353553385 : f32
    %42 = vector.broadcast %cst_12 : f32 to vector<16x8x8xf32>
    %43 = arith.mulf %41, %42 : vector<16x8x8xf32>
    %cst_13 = arith.constant dense<0xFF800000> : vector<16x8xf32>
    %44 = vector.multi_reduction <maximumf>, %43, %cst_13 [2] : vector<16x8x8xf32> to vector<16x8xf32>
    %45 = vector.shape_cast %44 : vector<16x8xf32> to vector<16x8x1xf32>
    %46 = vector.broadcast %45 : vector<16x8x1xf32> to vector<16x8x8xf32>
    %47 = arith.subf %43, %46 : vector<16x8x8xf32>
    %48 = math.exp %47 : vector<16x8x8xf32>
    %cst_14 = arith.constant dense<0.000000e+00> : vector<16x8xf32>
    %49 = vector.multi_reduction <add>, %48, %cst_14 [2] : vector<16x8x8xf32> to vector<16x8xf32>
    %50 = vector.shape_cast %49 : vector<16x8xf32> to vector<16x8x1xf32>
    %51 = tpu.reciprocal %50 {approx = true} : vector<16x8x1xf32> -> vector<16x8x1xf32>
    %52 = vector.broadcast %51 : vector<16x8x1xf32> to vector<16x8x8xf32>
    %53 = arith.mulf %48, %52 : vector<16x8x8xf32>
    %54 = vector.broadcast %26 : vector<16x1x8xf32> to vector<16x8x8xf32>
    %55 = arith.mulf %53, %54 : vector<16x8x8xf32>
    %cst_15 = arith.constant dense<0.000000e+00> : vector<16x8xf32>
    %56 = vector.multi_reduction <add>, %55, %cst_15 [2] : vector<16x8x8xf32> to vector<16x8xf32>
    %57 = vector.shape_cast %56 : vector<16x8xf32> to vector<16x8x1xf32>
    %c0_16 = arith.constant 0 : index
    %c0_17 = arith.constant 0 : index
    %58 = vector.load %arg6[%c0_16, %c0_17] : memref<1x32xf32, #tpu.memory_space<vmem>>, vector<1x32xf32>
    %59 = vector.shape_cast %58 : vector<1x32xf32> to vector<1x1x32xf32>
    %60 = vector.broadcast %57 : vector<16x8x1xf32> to vector<16x8x32xf32>
    %61 = vector.broadcast %59 : vector<1x1x32xf32> to vector<16x8x32xf32>
    %62 = arith.mulf %60, %61 : vector<16x8x32xf32>
    %c0_18 = arith.constant 0 : index
    %c0_19 = arith.constant 0 : index
    %63 = vector.load %arg7[%c0_18, %c0_19] : memref<1x32xf32, #tpu.memory_space<vmem>>, vector<1x32xf32>
    %64 = vector.shape_cast %63 : vector<1x32xf32> to vector<1x1x32xf32>
    %65 = vector.broadcast %64 : vector<1x1x32xf32> to vector<16x8x32xf32>
    %66 = arith.addf %62, %65 : vector<16x8x32xf32>
    %67 = vector.shape_cast %66 : vector<16x8x32xf32> to vector<128x32xf32>
    %c0_20 = arith.constant 0 : index
    %c0_21 = arith.constant 0 : index
    %68 = vector.load %arg8[%c0_20, %c0_21] : memref<32x24xf32, #tpu.memory_space<vmem>>, vector<32x24xf32>
    %cst_22 = arith.constant dense<0.000000e+00> : vector<128x24xf32>
    %69 = tpu.matmul %67, %68, %cst_22 {dimension_numbers = #tpu.dot_dimension_numbers<[1], [0], [0], [1], [0, 0, 1, 1], [], []>} : vector<128x32xf32>, vector<32x24xf32>, vector<128x24xf32> -> vector<128x24xf32>
    %c0_23 = arith.constant 0 : index
    %c0_24 = arith.constant 0 : index
    %70 = vector.load %arg9[%c0_23, %c0_24] : memref<1x24xf32, #tpu.memory_space<vmem>>, vector<1x24xf32>
    %71 = vector.broadcast %70 : vector<1x24xf32> to vector<128x24xf32>
    %72 = arith.addf %69, %71 : vector<128x24xf32>
    %73 = vector.shape_cast %72 : vector<128x24xf32> to vector<16x8x24xf32>
    %74 = vector.extract_strided_slice %73 {offsets = [0, 0, 0], sizes = [16, 8, 8], strides = [1, 1, 1]} : vector<16x8x24xf32> to vector<16x8x8xf32>
    %75 = vector.extract_strided_slice %73 {offsets = [0, 0, 8], sizes = [16, 8, 8], strides = [1, 1, 1]} : vector<16x8x24xf32> to vector<16x8x8xf32>
    %76 = vector.extract_strided_slice %73 {offsets = [0, 0, 16], sizes = [16, 8, 8], strides = [1, 1, 1]} : vector<16x8x24xf32> to vector<16x8x8xf32>
    "tpu.trace_start"() <{level = 10 : i32, message = "bnk,bmk->bnm"}> : () -> ()
    %cst_25 = arith.constant dense<0.000000e+00> : vector<16x8x8xf32>
    %77 = tpu.matmul %74, %75, %cst_25 {dimension_numbers = #tpu.dot_dimension_numbers<[2], [2], [1], [1], [0, 0, 0, 1, 1, 1], [0], [0]>} : vector<16x8x8xf32>, vector<16x8x8xf32>, vector<16x8x8xf32> -> vector<16x8x8xf32>
    "tpu.trace_stop"() : () -> ()
    %cst_26 = arith.constant 0.353553385 : f32
    %78 = vector.broadcast %cst_26 : f32 to vector<16x8x8xf32>
    %79 = arith.mulf %77, %78 : vector<16x8x8xf32>
    %cst_27 = arith.constant dense<0xFF800000> : vector<16x8xf32>
    %80 = vector.multi_reduction <maximumf>, %79, %cst_27 [2] : vector<16x8x8xf32> to vector<16x8xf32>
    %81 = vector.shape_cast %80 : vector<16x8xf32> to vector<16x8x1xf32>
    %82 = vector.broadcast %81 : vector<16x8x1xf32> to vector<16x8x8xf32>
    %83 = arith.subf %79, %82 : vector<16x8x8xf32>
    %84 = math.exp %83 : vector<16x8x8xf32>
    %cst_28 = arith.constant dense<0.000000e+00> : vector<16x8xf32>
    %85 = vector.multi_reduction <add>, %84, %cst_28 [2] : vector<16x8x8xf32> to vector<16x8xf32>
    %86 = vector.shape_cast %85 : vector<16x8xf32> to vector<16x8x1xf32>
    %87 = tpu.reciprocal %86 {approx = true} : vector<16x8x1xf32> -> vector<16x8x1xf32>
    %88 = vector.broadcast %87 : vector<16x8x1xf32> to vector<16x8x8xf32>
    %89 = arith.mulf %84, %88 : vector<16x8x8xf32>
    "tpu.trace_start"() <{level = 10 : i32, message = "bnm,bmk->bnk"}> : () -> ()
    %cst_29 = arith.constant dense<0.000000e+00> : vector<16x8x8xf32>
    %90 = tpu.matmul %89, %76, %cst_29 {dimension_numbers = #tpu.dot_dimension_numbers<[2], [1], [1], [2], [0, 0, 0, 1, 1, 2], [0], [0]>} : vector<16x8x8xf32>, vector<16x8x8xf32>, vector<16x8x8xf32> -> vector<16x8x8xf32>
    "tpu.trace_stop"() : () -> ()
    %cst_30 = arith.constant 1.000000e+00 : f32
    %91 = vector.broadcast %cst_30 : f32 to vector<16x8x8xf32>
    %92 = arith.mulf %90, %91 : vector<16x8x8xf32>
    %cst_31 = arith.constant dense<0xFF800000> : vector<16x8xf32>
    %93 = vector.multi_reduction <maximumf>, %92, %cst_31 [2] : vector<16x8x8xf32> to vector<16x8xf32>
    %94 = vector.shape_cast %93 : vector<16x8xf32> to vector<16x8x1xf32>
    %95 = vector.broadcast %94 : vector<16x8x1xf32> to vector<16x8x8xf32>
    %96 = arith.subf %92, %95 : vector<16x8x8xf32>
    %97 = math.exp %96 : vector<16x8x8xf32>
    %cst_32 = arith.constant dense<0.000000e+00> : vector<16x8xf32>
    %98 = vector.multi_reduction <add>, %97, %cst_32 [2] : vector<16x8x8xf32> to vector<16x8xf32>
    %99 = vector.shape_cast %98 : vector<16x8xf32> to vector<16x8x1xf32>
    %100 = tpu.reciprocal %99 {approx = true} : vector<16x8x1xf32> -> vector<16x8x1xf32>
    %101 = vector.broadcast %100 : vector<16x8x1xf32> to vector<16x8x8xf32>
    %102 = arith.mulf %97, %101 : vector<16x8x8xf32>
    %c0_33 = arith.constant 0 : index
    %c0_34 = arith.constant 0 : index
    %c0_35 = arith.constant 0 : index
    %103 = vector.load %arg10[%c0_33, %c0_34, %c0_35] : memref<16x8x8xf32, #tpu.memory_space<vmem>>, vector<16x8x8xf32>
    tpu.vector_store %arg10[%c0_33, %c0_34, %c0_35], %102 {strides = array<i32>} : memref<16x8x8xf32, #tpu.memory_space<vmem>>, vector<16x8x8xf32>,
    return
  }
  func.func @transform_0(%arg0: i32) -> (i32, i32) {
    %c0_i32 = arith.constant 0 : i32
    %c0_i32_0 = arith.constant 0 : i32
    return %arg0, %c0_i32 : i32, i32
  }
  func.func @transform_1(%arg0: i32) -> (i32, i32) {
    %c0_i32 = arith.constant 0 : i32
    %c0_i32_0 = arith.constant 0 : i32
    %c0_i32_1 = arith.constant 0 : i32
    return %c0_i32, %c0_i32_0 : i32, i32
  }
  func.func @transform_2(%arg0: i32) -> (i32, i32) {
    %c0_i32 = arith.constant 0 : i32
    %c0_i32_0 = arith.constant 0 : i32
    %c0_i32_1 = arith.constant 0 : i32
    return %c0_i32, %c0_i32_0 : i32, i32
  }
  func.func @transform_3(%arg0: i32) -> (i32, i32) {
    %c0_i32 = arith.constant 0 : i32
    %c0_i32_0 = arith.constant 0 : i32
    %c0_i32_1 = arith.constant 0 : i32
    return %c0_i32, %c0_i32_0 : i32, i32
  }
  func.func @transform_4(%arg0: i32) -> (i32, i32) {
    %c0_i32 = arith.constant 0 : i32
    %c0_i32_0 = arith.constant 0 : i32
    %c0_i32_1 = arith.constant 0 : i32
    return %c0_i32, %c0_i32_0 : i32, i32
  }
  func.func @transform_5(%arg0: i32) -> (i32, i32) {
    %c0_i32 = arith.constant 0 : i32
    %c0_i32_0 = arith.constant 0 : i32
    %c0_i32_1 = arith.constant 0 : i32
    return %c0_i32, %c0_i32_0 : i32, i32
  }
  func.func @transform_6(%arg0: i32) -> (i32, i32) {
    %c0_i32 = arith.constant 0 : i32
    %c0_i32_0 = arith.constant 0 : i32
    %c0_i32_1 = arith.constant 0 : i32
    return %c0_i32, %c0_i32_0 : i32, i32
  }
  func.func @transform_7(%arg0: i32) -> (i32, i32) {
    %c0_i32 = arith.constant 0 : i32
    %c0_i32_0 = arith.constant 0 : i32
    %c0_i32_1 = arith.constant 0 : i32
    return %c0_i32, %c0_i32_0 : i32, i32
  }
  func.func @transform_8(%arg0: i32) -> (i32, i32) {
    %c0_i32 = arith.constant 0 : i32
    %c0_i32_0 = arith.constant 0 : i32
    %c0_i32_1 = arith.constant 0 : i32
    return %c0_i32, %c0_i32_0 : i32, i32
  }
  func.func @transform_9(%arg0: i32) -> (i32, i32, i32) {
    %c0_i32 = arith.constant 0 : i32
    %c0_i32_0 = arith.constant 0 : i32
    %c0_i32_1 = arith.constant 0 : i32
    return %arg0, %c0_i32, %c0_i32_0 : i32, i32, i32
  }
}

</mosaic_0001>

<llo_original>
// kernel: tpu_custom_call.1
$region0: #{tpu_custom_call.1}
  #allocation0 [shape = 'u32[]', space=smem, size = 0x4, offset = 0x4, fixed_abs, tag = 'smem constant byte address 0x4 - core index']
  #allocation1 [shape = 'u32[72,128]{1,0:T(1,128)}', space=vmem, size = 0x9000, scoped, tag = 'internal scratch']
  %s0 = inlined_call_operand.vmem [shape: f32[32,8], index: 0, kind: input, shape index: {}]
  %s1 = inlined_call_operand.vmem [shape: f32[1,32], index: 1, kind: input, shape index: {}]
  %s2 = inlined_call_operand.vmem [shape: f32[1,32], index: 2, kind: input, shape index: {}]
  %s3 = inlined_call_operand.vmem [shape: f32[1,32], index: 3, kind: input, shape index: {}]
  %s4 = inlined_call_operand.vmem [shape: f32[1,32], index: 4, kind: input, shape index: {}]
  %s5 = inlined_call_operand.vmem [shape: f32[1,32], index: 5, kind: input, shape index: {}]
  %s6 = inlined_call_operand.vmem [shape: f32[1,32], index: 6, kind: input, shape index: {}]
  %s7 = inlined_call_operand.vmem [shape: f32[32,24], index: 7, kind: input, shape index: {}]
  %s8 = inlined_call_operand.vmem [shape: f32[1,24], index: 8, kind: input, shape index: {}]
  %s9 = inlined_call_operand.vmem [shape: f32[32,8,8], index: 9, kind: output, shape index: {}]
  %s10 = sld [smem:[#allocation0]]
  $region69: #{tpu_custom_call.1} parent=0
    _
  %s12 = ssub.s32 1, %s10
  %s13 = scalar_select 0, %s12, %s10
  loop: start=0, step=1, limit=4
  $region2: #{tpu_custom_call.1} parent=0 // loop_pre_header
    _
  $region3: #{tpu_custom_call.1} parent=0 // loop_header
    %s15 = sphi 0, %s19
    %p16 = scmp.ge.s32.totalorder %s15, 4
    %s25 = sphi 0, %s27
    %s28 = sphi 0, %s25
    %s29 = sphi 0, %s28
    %s45 = sphi 0, %s29
    %s49 = sphi 0, %s49
    %s51 = sphi 0, %s49
    %s52 = sphi 0, %s51
    %s66 = sphi 0, %s52
    %s70 = sphi 0, %s70
    %s72 = sphi 0, %s70
    %s73 = sphi 0, %s72
    %s87 = sphi 0, %s73
    %s91 = sphi 0, %s91
    %s93 = sphi 0, %s91
    %s94 = sphi 0, %s93
    %s108 = sphi 0, %s94
    %s112 = sphi 0, %s112
    %s114 = sphi 0, %s112
    %s115 = sphi 0, %s114
    %s129 = sphi 0, %s115
    %s133 = sphi 0, %s133
    %s135 = sphi 0, %s133
    %s136 = sphi 0, %s135
    %s150 = sphi 0, %s136
    %s154 = sphi 0, %s154
    %s156 = sphi 0, %s154
    %s157 = sphi 0, %s156
    %s171 = sphi 0, %s157
    %s175 = sphi 0, %s175
    %s177 = sphi 0, %s175
    %s178 = sphi 0, %s177
    %s192 = sphi 0, %s178
    %s196 = sphi 0, %s196
    %s198 = sphi 0, %s196
    %s199 = sphi 0, %s198
    %s213 = sphi 0, %s199
    %s219 = sphi 0, %s221
    %s222 = sphi 0, %s219
    %s223 = sphi 0, %s222
    %s239 = sphi 0, %s223
  $region4: #{tpu_custom_call.1} parent=0 // loop_header_branch
    %18 = sbr.rel (%p16) target = $region8
  $region5: #{tpu_custom_call.1} parent=0 // loop_body
    %s20 = ssub.s32 %s15, 1
    %s21 = ssub.s32 %s15, 2
    %s22 = sadd.s32 %s15, 1
    %s23 = ssub.s32 %s15, %s22
    %p24 = scmp.eq.s32.totalorder %s23, 0
    %s26 = sadd.s32 %s25, 1
    %s27 = scalar_select %p24, %s25, %s26
    %p30 = pneg %p24
    %p31 = scmp.eq.s32.totalorder %s15, 1
    %p32 = por %p30, %p31
    %p33 = scmp.ne.s32.totalorder %s25, %s28
    %p34 = scmp.eq.s32.totalorder %s15, 0
    %p35 = por %p33, %p34
    %p36 = scmp.ne.s32.totalorder %s25, %s28
    %p37 = scmp.eq.s32.totalorder %s20, 1
    %p38 = por %p36, %p37
    %p39 = scmp.ne.s32.totalorder %s28, %s29
    %p40 = scmp.eq.s32.totalorder %s20, 0
    %p41 = por %p39, %p40
    %p42 = scmp.ne.s32.totalorder %s28, %s29
    %p43 = scmp.eq.s32.totalorder %s21, 1
    %p44 = por %p42, %p43
    %p46 = scmp.ne.s32.totalorder %s29, %s45
    %p47 = scmp.eq.s32.totalorder %s21, 0
    %p48 = por %p46, %p47
    %s50 = sadd.s32 %s49, 1
    %p53 = scmp.eq.s32.totalorder %s15, 1
    %p54 = scmp.ne.s32.totalorder %s49, %s51
    %p55 = scmp.eq.s32.totalorder %s15, 0
    %p56 = por %p54, %p55
    %p57 = scmp.ne.s32.totalorder %s49, %s51
    %p58 = scmp.eq.s32.totalorder %s20, 1
    %p59 = por %p57, %p58
    %p60 = scmp.ne.s32.totalorder %s51, %s52
    %p61 = scmp.eq.s32.totalorder %s20, 0
    %p62 = por %p60, %p61
    %p63 = scmp.ne.s32.totalorder %s51, %s52
    %p64 = scmp.eq.s32.totalorder %s21, 1
    %p65 = por %p63, %p64
    %p67 = scmp.ne.s32.totalorder %s52, %s66
    %p68 = scmp.eq.s32.totalorder %s21, 0
    %p69 = por %p67, %p68
    %s71 = sadd.s32 %s70, 1
    %p74 = scmp.eq.s32.totalorder %s15, 1
    %p75 = scmp.ne.s32.totalorder %s70, %s72
    %p76 = scmp.eq.s32.totalorder %s15, 0
    %p77 = por %p75, %p76
    %p78 = scmp.ne.s32.totalorder %s70, %s72
    %p79 = scmp.eq.s32.totalorder %s20, 1
    %p80 = por %p78, %p79
    %p81 = scmp.ne.s32.totalorder %s72, %s73
    %p82 = scmp.eq.s32.totalorder %s20, 0
    %p83 = por %p81, %p82
    %p84 = scmp.ne.s32.totalorder %s72, %s73
    %p85 = scmp.eq.s32.totalorder %s21, 1
    %p86 = por %p84, %p85
    %p88 = scmp.ne.s32.totalorder %s73, %s87
    %p89 = scmp.eq.s32.totalorder %s21, 0
    %p90 = por %p88, %p89
    %s92 = sadd.s32 %s91, 1
    %p95 = scmp.eq.s32.totalorder %s15, 1
    %p96 = scmp.ne.s32.totalorder %s91, %s93
    %p97 = scmp.eq.s32.totalorder %s15, 0
    %p98 = por %p96, %p97
    %p99 = scmp.ne.s32.totalorder %s91, %s93
    %p100 = scmp.eq.s32.totalorder %s20, 1
    %p101 = por %p99, %p100
    %p102 = scmp.ne.s32.totalorder %s93, %s94
    %p103 = scmp.eq.s32.totalorder %s20, 0
    %p104 = por %p102, %p103
    %p105 = scmp.ne.s32.totalorder %s93, %s94
    %p106 = scmp.eq.s32.totalorder %s21, 1
    %p107 = por %p105, %p106
    %p109 = scmp.ne.s32.totalorder %s94, %s108
    %p110 = scmp.eq.s32.totalorder %s21, 0
    %p111 = por %p109, %p110
    %s113 = sadd.s32 %s112, 1
    %p116 = scmp.eq.s32.totalorder %s15, 1
    %p117 = scmp.ne.s32.totalorder %s112, %s114
    %p118 = scmp.eq.s32.totalorder %s15, 0
    %p119 = por %p117, %p118
    %p120 = scmp.ne.s32.totalorder %s112, %s114
    %p121 = scmp.eq.s32.totalorder %s20, 1
    %p122 = por %p120, %p121
    %p123 = scmp.ne.s32.totalorder %s114, %s115
    %p124 = scmp.eq.s32.totalorder %s20, 0
    %p125 = por %p123, %p124
    %p126 = scmp.ne.s32.totalorder %s114, %s115
    %p127 = scmp.eq.s32.totalorder %s21, 1
    %p128 = por %p126, %p127
    %p130 = scmp.ne.s32.totalorder %s115, %s129
    %p131 = scmp.eq.s32.totalorder %s21, 0
    %p132 = por %p130, %p131
    %s134 = sadd.s32 %s133, 1
    %p137 = scmp.eq.s32.totalorder %s15, 1
    %p138 = scmp.ne.s32.totalorder %s133, %s135
    %p139 = scmp.eq.s32.totalorder %s15, 0
    %p140 = por %p138, %p139
    %p141 = scmp.ne.s32.totalorder %s133, %s135
    %p142 = scmp.eq.s32.totalorder %s20, 1
    %p143 = por %p141, %p142
    %p144 = scmp.ne.s32.totalorder %s135, %s136
    %p145 = scmp.eq.s32.totalorder %s20, 0
    %p146 = por %p144, %p145
    %p147 = scmp.ne.s32.totalorder %s135, %s136
    %p148 = scmp.eq.s32.totalorder %s21, 1
    %p149 = por %p147, %p148
    %p151 = scmp.ne.s32.totalorder %s136, %s150
    %p152 = scmp.eq.s32.totalorder %s21, 0
    %p153 = por %p151, %p152
    %s155 = sadd.s32 %s154, 1
    %p158 = scmp.eq.s32.totalorder %s15, 1
    %p159 = scmp.ne.s32.totalorder %s154, %s156
    %p160 = scmp.eq.s32.totalorder %s15, 0
    %p161 = por %p159, %p160
    %p162 = scmp.ne.s32.totalorder %s154, %s156
    %p163 = scmp.eq.s32.totalorder %s20, 1
    %p164 = por %p162, %p163
    %p165 = scmp.ne.s32.totalorder %s156, %s157
    %p166 = scmp.eq.s32.totalorder %s20, 0
    %p167 = por %p165, %p166
    %p168 = scmp.ne.s32.totalorder %s156, %s157
    %p169 = scmp.eq.s32.totalorder %s21, 1
    %p170 = por %p168, %p169
    %p172 = scmp.ne.s32.totalorder %s157, %s171
    %p173 = scmp.eq.s32.totalorder %s21, 0
    %p174 = por %p172, %p173
    %s176 = sadd.s32 %s175, 1
    %p179 = scmp.eq.s32.totalorder %s15, 1
    %p180 = scmp.ne.s32.totalorder %s175, %s177
    %p181 = scmp.eq.s32.totalorder %s15, 0
    %p182 = por %p180, %p181
    %p183 = scmp.ne.s32.totalorder %s175, %s177
    %p184 = scmp.eq.s32.totalorder %s20, 1
    %p185 = por %p183, %p184
    %p186 = scmp.ne.s32.totalorder %s177, %s178
    %p187 = scmp.eq.s32.totalorder %s20, 0
    %p188 = por %p186, %p187
    %p189 = scmp.ne.s32.totalorder %s177, %s178
    %p190 = scmp.eq.s32.totalorder %s21, 1
    %p191 = por %p189, %p190
    %p193 = scmp.ne.s32.totalorder %s178, %s192
    %p194 = scmp.eq.s32.totalorder %s21, 0
    %p195 = por %p193, %p194
    %s197 = sadd.s32 %s196, 1
    %p200 = scmp.eq.s32.totalorder %s15, 1
    %p201 = scmp.ne.s32.totalorder %s196, %s198
    %p202 = scmp.eq.s32.totalorder %s15, 0
    %p203 = por %p201, %p202
    %p204 = scmp.ne.s32.totalorder %s196, %s198
    %p205 = scmp.eq.s32.totalorder %s20, 1
    %p206 = por %p204, %p205
    %p207 = scmp.ne.s32.totalorder %s198, %s199
    %p208 = scmp.eq.s32.totalorder %s20, 0
    %p209 = por %p207, %p208
    %p210 = scmp.ne.s32.totalorder %s198, %s199
    %p211 = scmp.eq.s32.totalorder %s21, 1
    %p212 = por %p210, %p211
    %p214 = scmp.ne.s32.totalorder %s199, %s213
    %p215 = scmp.eq.s32.totalorder %s21, 0
    %p216 = por %p214, %p215
    %s217 = ssub.s32 %s15, %s22
    %p218 = scmp.eq.s32.totalorder %s217, 0
    %s220 = sadd.s32 %s219, 1
    %s221 = scalar_select %p218, %s219, %s220
    %p224 = pneg %p218
    %p225 = scmp.eq.s32.totalorder %s15, 1
    %p226 = por %p224, %p225
    %p227 = scmp.ne.s32.totalorder %s219, %s222
    %p228 = scmp.eq.s32.totalorder %s15, 0
    %p229 = por %p227, %p228
    %p230 = scmp.ne.s32.totalorder %s219, %s222
    %p231 = scmp.eq.s32.totalorder %s20, 1
    %p232 = por %p230, %p231
    %p233 = scmp.ne.s32.totalorder %s222, %s223
    %p234 = scmp.eq.s32.totalorder %s20, 0
    %p235 = por %p233, %p234
    %p236 = scmp.ne.s32.totalorder %s222, %s223
    %p237 = scmp.eq.s32.totalorder %s21, 1
    %p238 = por %p236, %p237
    %p240 = scmp.ne.s32.totalorder %s223, %s239
    %p241 = scmp.eq.s32.totalorder %s21, 0
    %p242 = por %p240, %p241
    %p243 = scmp.le.s32.totalorder 1, %s15
    %p244 = scmp.lt.s32.totalorder %s15, 3
    %p245 = pnand %p243, %p244
    %p246 = pneg %p245
    // Predicated region
    $region9: #{tpu_custom_call.1} parent=5 // pred_check
      _
    $region10: #{tpu_custom_call.1} parent=5 // pred_check_branch
      %248 = sbr.rel (%p245) target = $region12
    $region11: #{tpu_custom_call.1} parent=5 // pred_region
      %s249 = ssub.s32 %s15, 1
      // Predicated region
      $region13: #{tpu_custom_call.1} parent=11 // pred_check
        %p250 = pneg %p62
      $region14: #{tpu_custom_call.1} parent=11 // pred_check_branch
        %252 = sbr.rel (%p250) target = $region16
      $region15: #{tpu_custom_call.1} parent=11 // pred_region
        _
      $region16: #{tpu_custom_call.1} parent=11 // pred_fallthru
        _
      // Predicated region
      $region17: #{tpu_custom_call.1} parent=11 // pred_check
        %p253 = pneg %p83
      $region18: #{tpu_custom_call.1} parent=11 // pred_check_branch
        %255 = sbr.rel (%p253) target = $region20
      $region19: #{tpu_custom_call.1} parent=11 // pred_region
        _
      $region20: #{tpu_custom_call.1} parent=11 // pred_fallthru
        _
      // Predicated region
      $region21: #{tpu_custom_call.1} parent=11 // pred_check
        %p256 = pneg %p104
      $region22: #{tpu_custom_call.1} parent=11 // pred_check_branch
        %258 = sbr.rel (%p256) target = $region24
      $region23: #{tpu_custom_call.1} parent=11 // pred_region
        _
      $region24: #{tpu_custom_call.1} parent=11 // pred_fallthru
        _
      // Predicated region
      $region25: #{tpu_custom_call.1} parent=11 // pred_check
        %p259 = pneg %p125
      $region26: #{tpu_custom_call.1} parent=11 // pred_check_branch
        %261 = sbr.rel (%p259) target = $region28
      $region27: #{tpu_custom_call.1} parent=11 // pred_region
        _
      $region28: #{tpu_custom_call.1} parent=11 // pred_fallthru
        _
      // Predicated region
      $region29: #{tpu_custom_call.1} parent=11 // pred_check
        %p262 = pneg %p146
      $region30: #{tpu_custom_call.1} parent=11 // pred_check_branch
        %264 = sbr.rel (%p262) target = $region32
      $region31: #{tpu_custom_call.1} parent=11 // pred_region
        _
      $region32: #{tpu_custom_call.1} parent=11 // pred_fallthru
        _
      // Predicated region
      $region33: #{tpu_custom_call.1} parent=11 // pred_check
        %p265 = pneg %p167
      $region34: #{tpu_custom_call.1} parent=11 // pred_check_branch
        %267 = sbr.rel (%p265) target = $region36
      $region35: #{tpu_custom_call.1} parent=11 // pred_region
        _
      $region36: #{tpu_custom_call.1} parent=11 // pred_fallthru
        _
      // Predicated region
      $region37: #{tpu_custom_call.1} parent=11 // pred_check
        %p268 = pneg %p188
      $region38: #{tpu_custom_call.1} parent=11 // pred_check_branch
        %270 = sbr.rel (%p268) target = $region40
      $region39: #{tpu_custom_call.1} parent=11 // pred_region
        _
      $region40: #{tpu_custom_call.1} parent=11 // pred_fallthru
        _
      // Predicated region
      $region41: #{tpu_custom_call.1} parent=11 // pred_check
        %p271 = pneg %p209
      $region42: #{tpu_custom_call.1} parent=11 // pred_check_branch
        %273 = sbr.rel (%p271) target = $region44
      $region43: #{tpu_custom_call.1} parent=11 // pred_region
        _
      $region44: #{tpu_custom_call.1} parent=11 // pred_fallthru
        _
    $region12: #{tpu_custom_call.1} parent=5 // pred_fallthru
      _
    %p274 = scmp.lt.s32.totalorder %s15, 2
    // Predicated region
    $region45: #{tpu_custom_call.1} parent=5 // pred_check
      %p275 = pneg %p274
    $region46: #{tpu_custom_call.1} parent=5 // pred_check_branch
      %277 = sbr.rel (%p275) target = $region48
    $region47: #{tpu_custom_call.1} parent=5 // pred_region
      // Predicated region
      $region49: #{tpu_custom_call.1} parent=47 // pred_check
        %p278 = pneg %p35
      $region50: #{tpu_custom_call.1} parent=47 // pred_check_branch
        %280 = sbr.rel (%p278) target = $region52
      $region51: #{tpu_custom_call.1} parent=47 // pred_region
        %s281 = smul.u32 2, %s15
        %p282 = scmp.lt.s32.totalorder %s281, 3
        %s283 = scalar_select %p282, %s281, 3
        %s284 = smul.addr %s283, 8
        %s285 = scalar_lea.vmem %s0, %s284
        %s286 = smul.u32 2, %s15
      $region52: #{tpu_custom_call.1} parent=47 // pred_fallthru
        _
    $region48: #{tpu_custom_call.1} parent=5 // pred_fallthru
      _
    %p287 = scmp.le.s32.totalorder 1, %s15
    %p288 = scmp.lt.s32.totalorder %s15, 3
    %p289 = pnand %p287, %p288
    %p290 = pneg %p289
    // Predicated region
    $region53: #{tpu_custom_call.1} parent=5 // pred_check
      _
    $region54: #{tpu_custom_call.1} parent=5 // pred_check_branch
      %292 = sbr.rel (%p289) target = $region56
    $region55: #{tpu_custom_call.1} parent=5 // pred_region
      %s293 = ssub.s32 %s15, 1
      %s294 = smul.u32 2, %s20
      %p295 = scmp.lt.s32.totalorder %s294, 3
      %s296 = scalar_select %p295, %s294, 3
      %s297 = smul.addr %s296, 8
      %s298 = scalar_lea.vmem %s0, %s297
      %p299 = pneg %p41
      %p300 = pneg %p38
      %p301 = pneg %p62
      %p302 = pneg %p59
      %p303 = pneg %p83
      %p304 = pneg %p80
      %p305 = pneg %p104
      %p306 = pneg %p101
      %p307 = pneg %p125
      %p308 = pneg %p122
      %p309 = pneg %p146
      %p310 = pneg %p143
      %p311 = pneg %p167
      %p312 = pneg %p164
      %p313 = pneg %p188
      %p314 = pneg %p185
      %p315 = pneg %p209
      %p316 = pneg %p206
      %p317 = pneg %p235
      %p318 = pneg %p232
      %s319 = smul.u32 16, %s20
      %p320 = scmp.lt.s32.totalorder %s319, 31
      %s321 = scalar_select %p320, %s319, 31
      %s322 = smul.addr %s321, 8
      %s323 = scalar_lea.vmem %s9, %s322
      %s324 = smul.u32 2, %s20
      %p325 = scmp.lt.s32.totalorder %s324, 3
      %s326 = scalar_select %p325, %s324, 3
      %s327 = smul.addr %s326, 8
      %s328 = scalar_lea.vmem %s0, %s327
      %s329 = smul.u32 2, %s20
      %s330 = smul.u32 16, %s20
      %p331 = scmp.lt.s32.totalorder %s330, 31
      %s332 = scalar_select %p331, %s330, 31
      %s333 = smul.addr %s332, 8
      %s334 = scalar_lea.vmem %s9, %s333
      %s335 = smul.u32 16, %s20
      %v336 = vld [vmem:[%s328] sm:$0xff]
      %v337 = vld [vmem:[%s328 + $0x8] sm:$0xff]
      %v338 = vld [vmem:[%s1] sm:$0x1]
      %v339 = vld [vmem:[%s2] sm:$0x1]
      %v340 = vld [vmem:[%s3] sm:$0x1]
      %v341 = vld [vmem:[%s4] sm:$0x1]
      %v342 = vmul.f32 %v338, %v340
      %vm343 = vcmask 253952
      %v344 = vsel %vm343, %v342, 0.0
      %345 = vadd.xlane.f32.xlu0 %v344
      %v346 = vpop.xlane.xlu0 %345
      %v347 = vrot.slane %v346, 4
      %v348 = vadd.f32 %v346, %v347
      %v349 = vrot.slane %v348, 2
      %v350 = vadd.f32 %v348, %v349
      %v351 = vrot.slane %v350, 1
      %v352 = vadd.f32 %v350, %v351
      %s353 = vtos %v352
      %v354 = vmul.f32 %v338, %v341
      %v355 = vsel %vm343, %v354, 0.0
      %356 = vadd.xlane.f32.xlu0 %v355
      %v357 = vpop.xlane.xlu0 %356
      %v358 = vrot.slane %v357, 4
      %v359 = vadd.f32 %v357, %v358
      %v360 = vrot.slane %v359, 2
      %v361 = vadd.f32 %v359, %v360
      %v362 = vrot.slane %v361, 1
      %v363 = vadd.f32 %v361, %v362
      %s364 = vtos %v363
      %v365 = vmul.f32 %v339, %v340
      %v366 = vsel %vm343, %v365, 0.0
      %367 = vadd.xlane.f32.xlu0 %v366
      %v368 = vpop.xlane.xlu0 %367
      %v369 = vrot.slane %v368, 4
      %v370 = vadd.f32 %v368, %v369
      %v371 = vrot.slane %v370, 2
      %v372 = vadd.f32 %v370, %v371
      %v373 = vrot.slane %v372, 1
      %v374 = vadd.f32 %v372, %v373
      %s375 = vtos %v374
      %v376 = vmul.f32 %v339, %v341
      %v377 = vsel %vm343, %v376, 0.0
      %378 = vadd.xlane.f32.xlu0 %v377
      %v379 = vpop.xlane.xlu0 %378
      %v380 = vrot.slane %v379, 4
      %v381 = vadd.f32 %v379, %v380
      %v382 = vrot.slane %v381, 2
      %v383 = vadd.f32 %v381, %v382
      %v384 = vrot.slane %v383, 1
      %v385 = vadd.f32 %v383, %v384
      %s386 = vtos %v385
      %v387 = vperm.slane %v336, 0
      %v388 = vlaneseq
      %v389 = vshrl.u32 %v388, 7
      %391 = vset.pattern.permute.xlu0 %v389
      %392 = vperm.xlu0 %391, %v387
      %v393 = vpop.permute.xlu0 %392
      %v394 = vperm.slane %v336, 1
      %v395 = vlaneseq
      %v396 = vshrl.u32 %v395, 7
      %398 = vset.pattern.permute.xlu0 %v396
      %399 = vperm.xlu0 %398, %v394
      %v400 = vpop.permute.xlu0 %399
      %v401 = vperm.slane %v336, 2
      %v402 = vlaneseq
      %v403 = vshrl.u32 %v402, 7
      %405 = vset.pattern.permute.xlu0 %v403
      %406 = vperm.xlu0 %405, %v401
      %v407 = vpop.permute.xlu0 %406
      %v408 = vperm.slane %v336, 3
      %v409 = vlaneseq
      %v410 = vshrl.u32 %v409, 7
      %412 = vset.pattern.permute.xlu0 %v410
      %413 = vperm.xlu0 %412, %v408
      %v414 = vpop.permute.xlu0 %413
      %v415 = vperm.slane %v336, 4
      %v416 = vlaneseq
      %v417 = vshrl.u32 %v416, 7
      %419 = vset.pattern.permute.xlu0 %v417
      %420 = vperm.xlu0 %419, %v415
      %v421 = vpop.permute.xlu0 %420
      %v422 = vperm.slane %v336, 5
      %v423 = vlaneseq
      %v424 = vshrl.u32 %v423, 7
      %426 = vset.pattern.permute.xlu0 %v424
      %427 = vperm.xlu0 %426, %v422
      %v428 = vpop.permute.xlu0 %427
      %v429 = vperm.slane %v336, 6
      %v430 = vlaneseq
      %v431 = vshrl.u32 %v430, 7
      %433 = vset.pattern.permute.xlu0 %v431
      %434 = vperm.xlu0 %433, %v429
      %v435 = vpop.permute.xlu0 %434
      %v436 = vperm.slane %v336, 7
      %v437 = vlaneseq
      %v438 = vshrl.u32 %v437, 7
      %440 = vset.pattern.permute.xlu0 %v438
      %441 = vperm.xlu0 %440, %v436
      %v442 = vpop.permute.xlu0 %441
      %v443 = vperm.slane %v337, 0
      %v444 = vlaneseq
      %v445 = vshrl.u32 %v444, 7
      %447 = vset.pattern.permute.xlu0 %v445
      %448 = vperm.xlu0 %447, %v443
      %v449 = vpop.permute.xlu0 %448
      %v450 = vperm.slane %v337, 1
      %v451 = vlaneseq
      %v452 = vshrl.u32 %v451, 7
      %454 = vset.pattern.permute.xlu0 %v452
      %455 = vperm.xlu0 %454, %v450
      %v456 = vpop.permute.xlu0 %455
      %v457 = vperm.slane %v337, 2
      %v458 = vlaneseq
      %v459 = vshrl.u32 %v458, 7
      %461 = vset.pattern.permute.xlu0 %v459
      %462 = vperm.xlu0 %461, %v457
      %v463 = vpop.permute.xlu0 %462
      %v464 = vperm.slane %v337, 3
      %v465 = vlaneseq
      %v466 = vshrl.u32 %v465, 7
      %468 = vset.pattern.permute.xlu0 %v466
      %469 = vperm.xlu0 %468, %v464
      %v470 = vpop.permute.xlu0 %469
      %v471 = vperm.slane %v337, 4
      %v472 = vlaneseq
      %v473 = vshrl.u32 %v472, 7
      %475 = vset.pattern.permute.xlu0 %v473
      %476 = vperm.xlu0 %475, %v471
      %v477 = vpop.permute.xlu0 %476
      %v478 = vperm.slane %v337, 5
      %v479 = vlaneseq
      %v480 = vshrl.u32 %v479, 7
      %482 = vset.pattern.permute.xlu0 %v480
      %483 = vperm.xlu0 %482, %v478
      %v484 = vpop.permute.xlu0 %483
      %v485 = vperm.slane %v337, 6
      %v486 = vlaneseq
      %v487 = vshrl.u32 %v486, 7
      %489 = vset.pattern.permute.xlu0 %v487
      %490 = vperm.xlu0 %489, %v485
      %v491 = vpop.permute.xlu0 %490
      %v492 = vperm.slane %v337, 7
      %v493 = vlaneseq
      %v494 = vshrl.u32 %v493, 7
      %496 = vset.pattern.permute.xlu0 %v494
      %497 = vperm.xlu0 %496, %v492
      %v498 = vpop.permute.xlu0 %497
      %v501 = vrot.slane %v336, 1
      %v502 = vrot.slane %v336, 2
      %v503 = vrot.slane %v336, 3
      %v504 = vrot.slane %v336, 4
      %v505 = vrot.slane %v336, 5
      %v506 = vrot.slane %v336, 6
      %v507 = vrot.slane %v336, 7
      %v508 = vrot.slane %v337, 1
      %v509 = vrot.slane %v337, 2
      %v510 = vrot.slane %v337, 3
      %v511 = vrot.slane %v337, 4
      %v512 = vrot.slane %v337, 5
      %v513 = vrot.slane %v337, 6
      %v514 = vrot.slane %v337, 7
      %v529 = vperm.slane %v336, 0
      %v530 = vperm.slane %v501, 0
      %v531 = vperm.slane %v502, 0
      %v532 = vperm.slane %v503, 0
      %v533 = vperm.slane %v504, 0
      %v534 = vperm.slane %v505, 0
      %v535 = vperm.slane %v506, 0
      %v536 = vperm.slane %v507, 0
      %v537 = vperm.slane %v337, 0
      %v538 = vperm.slane %v508, 0
      %v539 = vperm.slane %v509, 0
      %v540 = vperm.slane %v510, 0
      %v541 = vperm.slane %v511, 0
      %v542 = vperm.slane %v512, 0
      %v543 = vperm.slane %v513, 0
      %v544 = vperm.slane %v514, 0
      %v561 = vmul.f32 %v393, %v529
      %v562 = vmul.f32 %v400, %v530
      %v563 = vmul.f32 %v407, %v531
      %v564 = vmul.f32 %v414, %v532
      %v565 = vmul.f32 %v421, %v533
      %v566 = vmul.f32 %v428, %v534
      %v567 = vmul.f32 %v435, %v535
      %v568 = vmul.f32 %v442, %v536
      %v569 = vmul.f32 %v449, %v537
      %v570 = vmul.f32 %v456, %v538
      %v571 = vmul.f32 %v463, %v539
      %v572 = vmul.f32 %v470, %v540
      %v573 = vmul.f32 %v477, %v541
      %v574 = vmul.f32 %v484, %v542
      %v575 = vmul.f32 %v491, %v543
      %v576 = vmul.f32 %v498, %v544
      %v577 = vstv %s353
      %v578 = vmul.f32 %v577, %v561
      %v579 = vmul.f32 %v577, %v562
      %v580 = vmul.f32 %v577, %v563
      %v581 = vmul.f32 %v577, %v564
      %v582 = vmul.f32 %v577, %v565
      %v583 = vmul.f32 %v577, %v566
      %v584 = vmul.f32 %v577, %v567
      %v585 = vmul.f32 %v577, %v568
      %v586 = vmul.f32 %v577, %v569
      %v587 = vmul.f32 %v577, %v570
      %v588 = vmul.f32 %v577, %v571
      %v589 = vmul.f32 %v577, %v572
      %v590 = vmul.f32 %v577, %v573
      %v591 = vmul.f32 %v577, %v574
      %v592 = vmul.f32 %v577, %v575
      %v593 = vmul.f32 %v577, %v576
      %v594 = vstv %s364
      %v595 = vmul.f32 %v594, %v393
      %v596 = vmul.f32 %v594, %v400
      %v597 = vmul.f32 %v594, %v407
      %v598 = vmul.f32 %v594, %v414
      %v599 = vmul.f32 %v594, %v421
      %v600 = vmul.f32 %v594, %v428
      %v601 = vmul.f32 %v594, %v435
      %v602 = vmul.f32 %v594, %v442
      %v603 = vmul.f32 %v594, %v449
      %v604 = vmul.f32 %v594, %v456
      %v605 = vmul.f32 %v594, %v463
      %v606 = vmul.f32 %v594, %v470
      %v607 = vmul.f32 %v594, %v477
      %v608 = vmul.f32 %v594, %v484
      %v609 = vmul.f32 %v594, %v491
      %v610 = vmul.f32 %v594, %v498
      %v611 = vadd.f32 %v578, %v595
      %v612 = vadd.f32 %v579, %v596
      %v613 = vadd.f32 %v580, %v597
      %v614 = vadd.f32 %v581, %v598
      %v615 = vadd.f32 %v582, %v599
      %v616 = vadd.f32 %v583, %v600
      %v617 = vadd.f32 %v584, %v601
      %v618 = vadd.f32 %v585, %v602
      %v619 = vadd.f32 %v586, %v603
      %v620 = vadd.f32 %v587, %v604
      %v621 = vadd.f32 %v588, %v605
      %v622 = vadd.f32 %v589, %v606
      %v623 = vadd.f32 %v590, %v607
      %v624 = vadd.f32 %v591, %v608
      %v625 = vadd.f32 %v592, %v609
      %v626 = vadd.f32 %v593, %v610
      %v627 = vstv %s375
      %v628 = vmul.f32 %v627, %v336
      %v629 = vmul.f32 %v627, %v501
      %v630 = vmul.f32 %v627, %v502
      %v631 = vmul.f32 %v627, %v503
      %v632 = vmul.f32 %v627, %v504
      %v633 = vmul.f32 %v627, %v505
      %v634 = vmul.f32 %v627, %v506
      %v635 = vmul.f32 %v627, %v507
      %v636 = vmul.f32 %v627, %v337
      %v637 = vmul.f32 %v627, %v508
      %v638 = vmul.f32 %v627, %v509
      %v639 = vmul.f32 %v627, %v510
      %v640 = vmul.f32 %v627, %v511
      %v641 = vmul.f32 %v627, %v512
      %v642 = vmul.f32 %v627, %v513
      %v643 = vmul.f32 %v627, %v514
      %v660 = vperm.slane %v628, 0
      %v661 = vperm.slane %v629, 0
      %v662 = vperm.slane %v630, 0
      %v663 = vperm.slane %v631, 0
      %v664 = vperm.slane %v632, 0
      %v665 = vperm.slane %v633, 0
      %v666 = vperm.slane %v634, 0
      %v667 = vperm.slane %v635, 0
      %v668 = vperm.slane %v636, 0
      %v669 = vperm.slane %v637, 0
      %v670 = vperm.slane %v638, 0
      %v671 = vperm.slane %v639, 0
      %v672 = vperm.slane %v640, 0
      %v673 = vperm.slane %v641, 0
      %v674 = vperm.slane %v642, 0
      %v675 = vperm.slane %v643, 0
      %v692 = vadd.f32 %v611, %v660
      %v693 = vadd.f32 %v612, %v661
      %v694 = vadd.f32 %v613, %v662
      %v695 = vadd.f32 %v614, %v663
      %v696 = vadd.f32 %v615, %v664
      %v697 = vadd.f32 %v616, %v665
      %v698 = vadd.f32 %v617, %v666
      %v699 = vadd.f32 %v618, %v667
      %v700 = vadd.f32 %v619, %v668
      %v701 = vadd.f32 %v620, %v669
      %v702 = vadd.f32 %v621, %v670
      %v703 = vadd.f32 %v622, %v671
      %v704 = vadd.f32 %v623, %v672
      %v705 = vadd.f32 %v624, %v673
      %v706 = vadd.f32 %v625, %v674
      %v707 = vadd.f32 %v626, %v675
      %v708 = vstv %s386
      %v709 = vadd.f32 %v692, %v708
      %v710 = vadd.f32 %v693, %v708
      %v711 = vadd.f32 %v694, %v708
      %v712 = vadd.f32 %v695, %v708
      %v713 = vadd.f32 %v696, %v708
      %v714 = vadd.f32 %v697, %v708
      %v715 = vadd.f32 %v698, %v708
      %v716 = vadd.f32 %v699, %v708
      %v717 = vadd.f32 %v700, %v708
      %v718 = vadd.f32 %v701, %v708
      %v719 = vadd.f32 %v702, %v708
      %v720 = vadd.f32 %v703, %v708
      %v721 = vadd.f32 %v704, %v708
      %v722 = vadd.f32 %v705, %v708
      %v723 = vadd.f32 %v706, %v708
      %v724 = vadd.f32 %v707, %v708
      %v725 = vmul.f32 %v709, 0.35355338
      %v726 = vmul.f32 %v710, 0.35355338
      %v727 = vmul.f32 %v711, 0.35355338
      %v728 = vmul.f32 %v712, 0.35355338
      %v729 = vmul.f32 %v713, 0.35355338
      %v730 = vmul.f32 %v714, 0.35355338
      %v731 = vmul.f32 %v715, 0.35355338
      %v732 = vmul.f32 %v716, 0.35355338
      %v733 = vmul.f32 %v717, 0.35355338
      %v734 = vmul.f32 %v718, 0.35355338
      %v735 = vmul.f32 %v719, 0.35355338
      %v736 = vmul.f32 %v720, 0.35355338
      %v737 = vmul.f32 %v721, 0.35355338
      %v738 = vmul.f32 %v722, 0.35355338
      %v739 = vmul.f32 %v723, 0.35355338
      %v740 = vmul.f32 %v724, 0.35355338
      %vm741 = vcmask 64512
      %v742 = vsel %vm741, %v725, -inf
      %743 = vmax.xlane.f32.xlu0 %v742
      %v744 = vpop.xlane.xlu0 %743
      %v745 = vsel %vm741, %v726, -inf
      %746 = vmax.xlane.f32.xlu0 %v745
      %v747 = vpop.xlane.xlu0 %746
      %v748 = vsel %vm741, %v727, -inf
      %749 = vmax.xlane.f32.xlu0 %v748
      %v750 = vpop.xlane.xlu0 %749
      %v751 = vsel %vm741, %v728, -inf
      %752 = vmax.xlane.f32.xlu0 %v751
      %v753 = vpop.xlane.xlu0 %752
      %v754 = vsel %vm741, %v729, -inf
      %755 = vmax.xlane.f32.xlu0 %v754
      %v756 = vpop.xlane.xlu0 %755
      %v757 = vsel %vm741, %v730, -inf
      %758 = vmax.xlane.f32.xlu0 %v757
      %v759 = vpop.xlane.xlu0 %758
      %v760 = vsel %vm741, %v731, -inf
      %761 = vmax.xlane.f32.xlu0 %v760
      %v762 = vpop.xlane.xlu0 %761
      %v763 = vsel %vm741, %v732, -inf
      %764 = vmax.xlane.f32.xlu0 %v763
      %v765 = vpop.xlane.xlu0 %764
      %v766 = vsel %vm741, %v733, -inf
      %767 = vmax.xlane.f32.xlu0 %v766
      %v768 = vpop.xlane.xlu0 %767
      %v769 = vsel %vm741, %v734, -inf
      %770 = vmax.xlane.f32.xlu0 %v769
      %v771 = vpop.xlane.xlu0 %770
      %v772 = vsel %vm741, %v735, -inf
      %773 = vmax.xlane.f32.xlu0 %v772
      %v774 = vpop.xlane.xlu0 %773
      %v775 = vsel %vm741, %v736, -inf
      %776 = vmax.xlane.f32.xlu0 %v775
      %v777 = vpop.xlane.xlu0 %776
      %v778 = vsel %vm741, %v737, -inf
      %779 = vmax.xlane.f32.xlu0 %v778
      %v780 = vpop.xlane.xlu0 %779
      %v781 = vsel %vm741, %v738, -inf
      %782 = vmax.xlane.f32.xlu0 %v781
      %v783 = vpop.xlane.xlu0 %782
      %v784 = vsel %vm741, %v739, -inf
      %785 = vmax.xlane.f32.xlu0 %v784
      %v786 = vpop.xlane.xlu0 %785
      %v787 = vsel %vm741, %v740, -inf
      %788 = vmax.xlane.f32.xlu0 %v787
      %v789 = vpop.xlane.xlu0 %788
      %v790 = vsub.f32 %v725, %v744
      %v791 = vsub.f32 %v726, %v747
      %v792 = vsub.f32 %v727, %v750
      %v793 = vsub.f32 %v728, %v753
      %v794 = vsub.f32 %v729, %v756
      %v795 = vsub.f32 %v730, %v759
      %v796 = vsub.f32 %v731, %v762
      %v797 = vsub.f32 %v732, %v765
      %v798 = vsub.f32 %v733, %v768
      %v799 = vsub.f32 %v734, %v771
      %v800 = vsub.f32 %v735, %v774
      %v801 = vsub.f32 %v736, %v777
      %v802 = vsub.f32 %v737, %v780
      %v803 = vsub.f32 %v738, %v783
      %v804 = vsub.f32 %v739, %v786
      %v805 = vsub.f32 %v740, %v789
      %v806 = vmul.f32 %v790, 1.442695
      %v807 = vpow.pop %v806
      %v808 = vmul.f32 %v791, 1.442695
      %v809 = vpow.pop %v808
      %v810 = vmul.f32 %v792, 1.442695
      %v811 = vpow.pop %v810
      %v812 = vmul.f32 %v793, 1.442695
      %v813 = vpow.pop %v812
      %v814 = vmul.f32 %v794, 1.442695
      %v815 = vpow.pop %v814
      %v816 = vmul.f32 %v795, 1.442695
      %v817 = vpow.pop %v816
      %v818 = vmul.f32 %v796, 1.442695
      %v819 = vpow.pop %v818
      %v820 = vmul.f32 %v797, 1.442695
      %v821 = vpow.pop %v820
      %v822 = vmul.f32 %v798, 1.442695
      %v823 = vpow.pop %v822
      %v824 = vmul.f32 %v799, 1.442695
      %v825 = vpow.pop %v824
      %v826 = vmul.f32 %v800, 1.442695
      %v827 = vpow.pop %v826
      %v828 = vmul.f32 %v801, 1.442695
      %v829 = vpow.pop %v828
      %v830 = vmul.f32 %v802, 1.442695
      %v831 = vpow.pop %v830
      %v832 = vmul.f32 %v803, 1.442695
      %v833 = vpow.pop %v832
      %v834 = vmul.f32 %v804, 1.442695
      %v835 = vpow.pop %v834
      %v836 = vmul.f32 %v805, 1.442695
      %v837 = vpow.pop %v836
      %v838 = vsel %vm741, %v807, 0.0
      %839 = vadd.xlane.f32.xlu0 %v838
      %v840 = vpop.xlane.xlu0 %839
      %v841 = vsel %vm741, %v809, 0.0
      %842 = vadd.xlane.f32.xlu0 %v841
      %v843 = vpop.xlane.xlu0 %842
      %v844 = vsel %vm741, %v811, 0.0
      %845 = vadd.xlane.f32.xlu0 %v844
      %v846 = vpop.xlane.xlu0 %845
      %v847 = vsel %vm741, %v813, 0.0
      %848 = vadd.xlane.f32.xlu0 %v847
      %v849 = vpop.xlane.xlu0 %848
      %v850 = vsel %vm741, %v815, 0.0
      %851 = vadd.xlane.f32.xlu0 %v850
      %v852 = vpop.xlane.xlu0 %851
      %v853 = vsel %vm741, %v817, 0.0
      %854 = vadd.xlane.f32.xlu0 %v853
      %v855 = vpop.xlane.xlu0 %854
      %v856 = vsel %vm741, %v819, 0.0
      %857 = vadd.xlane.f32.xlu0 %v856
      %v858 = vpop.xlane.xlu0 %857
      %v859 = vsel %vm741, %v821, 0.0
      %860 = vadd.xlane.f32.xlu0 %v859
      %v861 = vpop.xlane.xlu0 %860
      %v862 = vsel %vm741, %v823, 0.0
      %863 = vadd.xlane.f32.xlu0 %v862
      %v864 = vpop.xlane.xlu0 %863
      %v865 = vsel %vm741, %v825, 0.0
      %866 = vadd.xlane.f32.xlu0 %v865
      %v867 = vpop.xlane.xlu0 %866
      %v868 = vsel %vm741, %v827, 0.0
      %869 = vadd.xlane.f32.xlu0 %v868
      %v870 = vpop.xlane.xlu0 %869
      %v871 = vsel %vm741, %v829, 0.0
      %872 = vadd.xlane.f32.xlu0 %v871
      %v873 = vpop.xlane.xlu0 %872
      %v874 = vsel %vm741, %v831, 0.0
      %875 = vadd.xlane.f32.xlu0 %v874
      %v876 = vpop.xlane.xlu0 %875
      %v877 = vsel %vm741, %v833, 0.0
      %878 = vadd.xlane.f32.xlu0 %v877
      %v879 = vpop.xlane.xlu0 %878
      %v880 = vsel %vm741, %v835, 0.0
      %881 = vadd.xlane.f32.xlu0 %v880
      %v882 = vpop.xlane.xlu0 %881
      %v883 = vsel %vm741, %v837, 0.0
      %884 = vadd.xlane.f32.xlu0 %v883
      %v885 = vpop.xlane.xlu0 %884
      %v886 = vrcp.pop %v840
      %v887 = vrcp.pop %v843
      %v888 = vrcp.pop %v846
      %v889 = vrcp.pop %v849
      %v890 = vrcp.pop %v852
      %v891 = vrcp.pop %v855
      %v892 = vrcp.pop %v858
      %v893 = vrcp.pop %v861
      %v894 = vrcp.pop %v864
      %v895 = vrcp.pop %v867
      %v896 = vrcp.pop %v870
      %v897 = vrcp.pop %v873
      %v898 = vrcp.pop %v876
      %v899 = vrcp.pop %v879
      %v900 = vrcp.pop %v882
      %v901 = vrcp.pop %v885
      %v902 = vmul.f32 %v807, %v886
      %v903 = vmul.f32 %v809, %v887
      %v904 = vmul.f32 %v811, %v888
      %v905 = vmul.f32 %v813, %v889
      %v906 = vmul.f32 %v815, %v890
      %v907 = vmul.f32 %v817, %v891
      %v908 = vmul.f32 %v819, %v892
      %v909 = vmul.f32 %v821, %v893
      %v910 = vmul.f32 %v823, %v894
      %v911 = vmul.f32 %v825, %v895
      %v912 = vmul.f32 %v827, %v896
      %v913 = vmul.f32 %v829, %v897
      %v914 = vmul.f32 %v831, %v898
      %v915 = vmul.f32 %v833, %v899
      %v916 = vmul.f32 %v835, %v900
      %v917 = vmul.f32 %v837, %v901
      %v918 = vmul.f32 %v902, %v529
      %v919 = vmul.f32 %v903, %v530
      %v920 = vmul.f32 %v904, %v531
      %v921 = vmul.f32 %v905, %v532
      %v922 = vmul.f32 %v906, %v533
      %v923 = vmul.f32 %v907, %v534
      %v924 = vmul.f32 %v908, %v535
      %v925 = vmul.f32 %v909, %v536
      %v926 = vmul.f32 %v910, %v537
      %v927 = vmul.f32 %v911, %v538
      %v928 = vmul.f32 %v912, %v539
      %v929 = vmul.f32 %v913, %v540
      %v930 = vmul.f32 %v914, %v541
      %v931 = vmul.f32 %v915, %v542
      %v932 = vmul.f32 %v916, %v543
      %v933 = vmul.f32 %v917, %v544
      %v934 = vsel %vm741, %v918, 0.0
      %935 = vadd.xlane.f32.xlu0 %v934
      %v936 = vpop.xlane.xlu0 %935
      %v937 = vsel %vm741, %v919, 0.0
      %938 = vadd.xlane.f32.xlu0 %v937
      %v939 = vpop.xlane.xlu0 %938
      %v940 = vsel %vm741, %v920, 0.0
      %941 = vadd.xlane.f32.xlu0 %v940
      %v942 = vpop.xlane.xlu0 %941
      %v943 = vsel %vm741, %v921, 0.0
      %944 = vadd.xlane.f32.xlu0 %v943
      %v945 = vpop.xlane.xlu0 %944
      %v946 = vsel %vm741, %v922, 0.0
      %947 = vadd.xlane.f32.xlu0 %v946
      %v948 = vpop.xlane.xlu0 %947
      %v949 = vsel %vm741, %v923, 0.0
      %950 = vadd.xlane.f32.xlu0 %v949
      %v951 = vpop.xlane.xlu0 %950
      %v952 = vsel %vm741, %v924, 0.0
      %953 = vadd.xlane.f32.xlu0 %v952
      %v954 = vpop.xlane.xlu0 %953
      %v955 = vsel %vm741, %v925, 0.0
      %956 = vadd.xlane.f32.xlu0 %v955
      %v957 = vpop.xlane.xlu0 %956
      %v958 = vsel %vm741, %v926, 0.0
      %959 = vadd.xlane.f32.xlu0 %v958
      %v960 = vpop.xlane.xlu0 %959
      %v961 = vsel %vm741, %v927, 0.0
      %962 = vadd.xlane.f32.xlu0 %v961
      %v963 = vpop.xlane.xlu0 %962
      %v964 = vsel %vm741, %v928, 0.0
      %965 = vadd.xlane.f32.xlu0 %v964
      %v966 = vpop.xlane.xlu0 %965
      %v967 = vsel %vm741, %v929, 0.0
      %968 = vadd.xlane.f32.xlu0 %v967
      %v969 = vpop.xlane.xlu0 %968
      %v970 = vsel %vm741, %v930, 0.0
      %971 = vadd.xlane.f32.xlu0 %v970
      %v972 = vpop.xlane.xlu0 %971
      %v973 = vsel %vm741, %v931, 0.0
      %974 = vadd.xlane.f32.xlu0 %v973
      %v975 = vpop.xlane.xlu0 %974
      %v976 = vsel %vm741, %v932, 0.0
      %977 = vadd.xlane.f32.xlu0 %v976
      %v978 = vpop.xlane.xlu0 %977
      %v979 = vsel %vm741, %v933, 0.0
      %980 = vadd.xlane.f32.xlu0 %v979
      %v981 = vpop.xlane.xlu0 %980
      %v982 = vld [vmem:[%s5] sm:$0x1]
      %v984 = vperm.slane %v982, 0
      %v986 = vmul.f32 %v936, %v984
      %v987 = vmul.f32 %v939, %v984
      %v988 = vmul.f32 %v942, %v984
      %v989 = vmul.f32 %v945, %v984
      %v990 = vmul.f32 %v948, %v984
      %v991 = vmul.f32 %v951, %v984
      %v992 = vmul.f32 %v954, %v984
      %v993 = vmul.f32 %v957, %v984
      %v994 = vmul.f32 %v960, %v984
      %v995 = vmul.f32 %v963, %v984
      %v996 = vmul.f32 %v966, %v984
      %v997 = vmul.f32 %v969, %v984
      %v998 = vmul.f32 %v972, %v984
      %v999 = vmul.f32 %v975, %v984
      %v1000 = vmul.f32 %v978, %v984
      %v1001 = vmul.f32 %v981, %v984
      %v1002 = vld [vmem:[%s6] sm:$0x1]
      %v1004 = vperm.slane %v1002, 0
      %v1006 = vadd.f32 %v986, %v1004
      %v1007 = vadd.f32 %v987, %v1004
      %v1008 = vadd.f32 %v988, %v1004
      %v1009 = vadd.f32 %v989, %v1004
      %v1010 = vadd.f32 %v990, %v1004
      %v1011 = vadd.f32 %v991, %v1004
      %v1012 = vadd.f32 %v992, %v1004
      %v1013 = vadd.f32 %v993, %v1004
      %v1014 = vadd.f32 %v994, %v1004
      %v1015 = vadd.f32 %v995, %v1004
      %v1016 = vadd.f32 %v996, %v1004
      %v1017 = vadd.f32 %v997, %v1004
      %v1018 = vadd.f32 %v998, %v1004
      %v1019 = vadd.f32 %v999, %v1004
      %v1020 = vadd.f32 %v1000, %v1004
      %v1021 = vadd.f32 %v1001, %v1004
      %v1022 = vld [vmem:[%s7] sm:$0xff]
      %v1023 = vld [vmem:[%s7 + $0x8] sm:$0xff]
      %v1024 = vld [vmem:[%s7 + $0x10] sm:$0xff]
      %v1025 = vld [vmem:[%s7 + $0x18] sm:$0xff]
      %v1026 = vld [vmem:[%s8] sm:$0x1]
      %v1028 = vperm.slane %v1026, 0
      %vm1030 = vcmask 261120
      %v1032 = vsel %vm1030, %v1006, 0
      %v1035 = vsel %vm1030, %v1007, 0
      %v1038 = vsel %vm1030, %v1008, 0
      %v1041 = vsel %vm1030, %v1009, 0
      %v1044 = vsel %vm1030, %v1010, 0
      %v1047 = vsel %vm1030, %v1011, 0
      %v1050 = vsel %vm1030, %v1012, 0
      %v1053 = vsel %vm1030, %v1013, 0
      %v1056 = vsel %vm1030, %v1014, 0
      %v1059 = vsel %vm1030, %v1015, 0
      %v1062 = vsel %vm1030, %v1016, 0
      %v1065 = vsel %vm1030, %v1017, 0
      %v1068 = vsel %vm1030, %v1018, 0
      %v1071 = vsel %vm1030, %v1019, 0
      %v1074 = vsel %vm1030, %v1020, 0
      %v1077 = vsel %vm1030, %v1021, 0
      %1079 = vmatpush.msra.mxu0 0.0
      %1080 = vmatpush.msra.mxu0 0.0
      %1081 = vmatpush.msra.mxu0 0.0
      %1082 = vmatpush.msra.mxu0 0.0
      %1083 = vmatpush.msra.mxu0 0.0
      %1084 = vmatpush.msra.mxu0 0.0
      %1085 = vmatpush.msra.mxu0 0.0
      %1086 = vmatpush.msra.mxu0 0.0
      %1087 = vmatpush.msra.mxu0 0.0
      %1088 = vmatpush.msra.mxu0 0.0
      %1089 = vmatpush.msra.mxu0 0.0
      %1090 = vmatpush.msra.mxu0 0.0
      %1091 = vmatpush.msra.mxu0 %v1025
      %1092 = vmatpush.msra.mxu0 %v1024
      %1093 = vmatpush.msra.mxu0 %v1023
      %1094 = vmatpush.msra.mxu0 %v1022
      %1095 = vmatmul.f32.gmra.mxu0 %v1032
      %v1096 = vpop.f32.mrf.mxu0
      %v1097 = vadd.f32 %v1028, %v1096
      %1098 = vmatmul.f32.gmra.mxu0 %v1035
      %v1099 = vpop.f32.mrf.mxu0
      %v1100 = vadd.f32 %v1028, %v1099
      %1101 = vmatmul.f32.gmra.mxu0 %v1038
      %v1102 = vpop.f32.mrf.mxu0
      %v1103 = vadd.f32 %v1028, %v1102
      %1104 = vmatmul.f32.gmra.mxu0 %v1041
      %v1105 = vpop.f32.mrf.mxu0
      %v1106 = vadd.f32 %v1028, %v1105
      %1107 = vmatmul.f32.gmra.mxu0 %v1044
      %v1108 = vpop.f32.mrf.mxu0
      %v1109 = vadd.f32 %v1028, %v1108
      %1110 = vmatmul.f32.gmra.mxu0 %v1047
      %v1111 = vpop.f32.mrf.mxu0
      %v1112 = vadd.f32 %v1028, %v1111
      %1113 = vmatmul.f32.gmra.mxu0 %v1050
      %v1114 = vpop.f32.mrf.mxu0
      %v1115 = vadd.f32 %v1028, %v1114
      %1116 = vmatmul.f32.gmra.mxu0 %v1053
      %v1117 = vpop.f32.mrf.mxu0
      %v1118 = vadd.f32 %v1028, %v1117
      %1119 = vmatmul.f32.gmra.mxu0 %v1056
      %v1120 = vpop.f32.mrf.mxu0
      %v1121 = vadd.f32 %v1028, %v1120
      %1122 = vmatmul.f32.gmra.mxu0 %v1059
      %v1123 = vpop.f32.mrf.mxu0
      %v1124 = vadd.f32 %v1028, %v1123
      %1125 = vmatmul.f32.gmra.mxu0 %v1062
      %v1126 = vpop.f32.mrf.mxu0
      %v1127 = vadd.f32 %v1028, %v1126
      %1128 = vmatmul.f32.gmra.mxu0 %v1065
      %v1129 = vpop.f32.mrf.mxu0
      %v1130 = vadd.f32 %v1028, %v1129
      %1131 = vmatmul.f32.gmra.mxu0 %v1068
      %v1132 = vpop.f32.mrf.mxu0
      %v1133 = vadd.f32 %v1028, %v1132
      %1134 = vmatmul.f32.gmra.mxu0 %v1071
      %v1135 = vpop.f32.mrf.mxu0
      %v1136 = vadd.f32 %v1028, %v1135
      %1137 = vmatmul.f32.gmra.mxu0 %v1074
      %v1138 = vpop.f32.mrf.mxu0
      %v1139 = vadd.f32 %v1028, %v1138
      %1140 = vmatmul.f32.gmra.mxu0 %v1077
      %v1141 = vpop.f32.mrf.mxu0
      %v1142 = vadd.f32 %v1028, %v1141
      %1143 = vdwg.mxu0
      %1145 = vrot.lane.b32.xlu0 %v1097, 120
      %v1146 = vpop.permute.xlu0 %1145
      %v1147 = vsel %vm741, %v1097, 0
      %v1149 = vsel %vm741, %v1146, 0
      %1151 = vmatpush.xpose.msra.mxu0 0.0
      %1152 = vmatpush.xpose.msra.mxu0 0.0
      %1153 = vmatpush.xpose.msra.mxu0 0.0
      %1154 = vmatpush.xpose.msra.mxu0 0.0
      %1155 = vmatpush.xpose.msra.mxu0 0.0
      %1156 = vmatpush.xpose.msra.mxu0 0.0
      %1157 = vmatpush.xpose.msra.mxu0 0.0
      %1158 = vmatpush.xpose.msra.mxu0 0.0
      %1159 = vmatpush.xpose.msra.mxu0 0.0
      %1160 = vmatpush.xpose.msra.mxu0 0.0
      %1161 = vmatpush.xpose.msra.mxu0 0.0
      %1162 = vmatpush.xpose.msra.mxu0 0.0
      %1163 = vmatpush.xpose.msra.mxu0 0.0
      %1164 = vmatpush.xpose.msra.mxu0 0.0
      %1165 = vmatpush.xpose.msra.mxu0 0.0
      %1166 = vmatpush.xpose.msra.mxu0 %v1149
      %1167 = vmatmul.f32.gmra.mxu0 %v1147
      %v1168 = vpop.f32.mrf.mxu0
      %v1169 = vadd.f32 0.0, %v1168
      %1170 = vdwg.mxu0
      %1172 = vrot.lane.b32.xlu0 %v1100, 120
      %v1173 = vpop.permute.xlu0 %1172
      %v1174 = vsel %vm741, %v1100, 0
      %v1176 = vsel %vm741, %v1173, 0
      %1178 = vmatpush.xpose.msra.mxu0 0.0
      %1179 = vmatpush.xpose.msra.mxu0 0.0
      %1180 = vmatpush.xpose.msra.mxu0 0.0
      %1181 = vmatpush.xpose.msra.mxu0 0.0
      %1182 = vmatpush.xpose.msra.mxu0 0.0
      %1183 = vmatpush.xpose.msra.mxu0 0.0
      %1184 = vmatpush.xpose.msra.mxu0 0.0
      %1185 = vmatpush.xpose.msra.mxu0 0.0
      %1186 = vmatpush.xpose.msra.mxu0 0.0
      %1187 = vmatpush.xpose.msra.mxu0 0.0
      %1188 = vmatpush.xpose.msra.mxu0 0.0
      %1189 = vmatpush.xpose.msra.mxu0 0.0
      %1190 = vmatpush.xpose.msra.mxu0 0.0
      %1191 = vmatpush.xpose.msra.mxu0 0.0
      %1192 = vmatpush.xpose.msra.mxu0 0.0
      %1193 = vmatpush.xpose.msra.mxu0 %v1176
      %1194 = vmatmul.f32.gmra.mxu0 %v1174
      %v1195 = vpop.f32.mrf.mxu0
      %v1196 = vadd.f32 0.0, %v1195
      %1197 = vdwg.mxu0
      %1199 = vrot.lane.b32.xlu0 %v1103, 120
      %v1200 = vpop.permute.xlu0 %1199
      %v1201 = vsel %vm741, %v1103, 0
      %v1203 = vsel %vm741, %v1200, 0
      %1205 = vmatpush.xpose.msra.mxu0 0.0
      %1206 = vmatpush.xpose.msra.mxu0 0.0
      %1207 = vmatpush.xpose.msra.mxu0 0.0
      %1208 = vmatpush.xpose.msra.mxu0 0.0
      %1209 = vmatpush.xpose.msra.mxu0 0.0
      %1210 = vmatpush.xpose.msra.mxu0 0.0
      %1211 = vmatpush.xpose.msra.mxu0 0.0
      %1212 = vmatpush.xpose.msra.mxu0 0.0
      %1213 = vmatpush.xpose.msra.mxu0 0.0
      %1214 = vmatpush.xpose.msra.mxu0 0.0
      %1215 = vmatpush.xpose.msra.mxu0 0.0
      %1216 = vmatpush.xpose.msra.mxu0 0.0
      %1217 = vmatpush.xpose.msra.mxu0 0.0
      %1218 = vmatpush.xpose.msra.mxu0 0.0
      %1219 = vmatpush.xpose.msra.mxu0 0.0
      %1220 = vmatpush.xpose.msra.mxu0 %v1203
      %1221 = vmatmul.f32.gmra.mxu0 %v1201
      %v1222 = vpop.f32.mrf.mxu0
      %v1223 = vadd.f32 0.0, %v1222
      %1224 = vdwg.mxu0
      %1226 = vrot.lane.b32.xlu0 %v1106, 120
      %v1227 = vpop.permute.xlu0 %1226
      %v1228 = vsel %vm741, %v1106, 0
      %v1230 = vsel %vm741, %v1227, 0
      %1232 = vmatpush.xpose.msra.mxu0 0.0
      %1233 = vmatpush.xpose.msra.mxu0 0.0
      %1234 = vmatpush.xpose.msra.mxu0 0.0
      %1235 = vmatpush.xpose.msra.mxu0 0.0
      %1236 = vmatpush.xpose.msra.mxu0 0.0
      %1237 = vmatpush.xpose.msra.mxu0 0.0
      %1238 = vmatpush.xpose.msra.mxu0 0.0
      %1239 = vmatpush.xpose.msra.mxu0 0.0
      %1240 = vmatpush.xpose.msra.mxu0 0.0
      %1241 = vmatpush.xpose.msra.mxu0 0.0
      %1242 = vmatpush.xpose.msra.mxu0 0.0
      %1243 = vmatpush.xpose.msra.mxu0 0.0
      %1244 = vmatpush.xpose.msra.mxu0 0.0
      %1245 = vmatpush.xpose.msra.mxu0 0.0
      %1246 = vmatpush.xpose.msra.mxu0 0.0
      %1247 = vmatpush.xpose.msra.mxu0 %v1230
      %1248 = vmatmul.f32.gmra.mxu0 %v1228
      %v1249 = vpop.f32.mrf.mxu0
      %v1250 = vadd.f32 0.0, %v1249
      %1251 = vdwg.mxu0
      %1253 = vrot.lane.b32.xlu0 %v1109, 120
      %v1254 = vpop.permute.xlu0 %1253
      %v1255 = vsel %vm741, %v1109, 0
      %v1257 = vsel %vm741, %v1254, 0
      %1259 = vmatpush.xpose.msra.mxu0 0.0
      %1260 = vmatpush.xpose.msra.mxu0 0.0
      %1261 = vmatpush.xpose.msra.mxu0 0.0
      %1262 = vmatpush.xpose.msra.mxu0 0.0
      %1263 = vmatpush.xpose.msra.mxu0 0.0
      %1264 = vmatpush.xpose.msra.mxu0 0.0
      %1265 = vmatpush.xpose.msra.mxu0 0.0
      %1266 = vmatpush.xpose.msra.mxu0 0.0
      %1267 = vmatpush.xpose.msra.mxu0 0.0
      %1268 = vmatpush.xpose.msra.mxu0 0.0
      %1269 = vmatpush.xpose.msra.mxu0 0.0
      %1270 = vmatpush.xpose.msra.mxu0 0.0
      %1271 = vmatpush.xpose.msra.mxu0 0.0
      %1272 = vmatpush.xpose.msra.mxu0 0.0
      %1273 = vmatpush.xpose.msra.mxu0 0.0
      %1274 = vmatpush.xpose.msra.mxu0 %v1257
      %1275 = vmatmul.f32.gmra.mxu0 %v1255
      %v1276 = vpop.f32.mrf.mxu0
      %v1277 = vadd.f32 0.0, %v1276
      %1278 = vdwg.mxu0
      %1280 = vrot.lane.b32.xlu0 %v1112, 120
      %v1281 = vpop.permute.xlu0 %1280
      %v1282 = vsel %vm741, %v1112, 0
      %v1284 = vsel %vm741, %v1281, 0
      %1286 = vmatpush.xpose.msra.mxu0 0.0
      %1287 = vmatpush.xpose.msra.mxu0 0.0
      %1288 = vmatpush.xpose.msra.mxu0 0.0
      %1289 = vmatpush.xpose.msra.mxu0 0.0
      %1290 = vmatpush.xpose.msra.mxu0 0.0
      %1291 = vmatpush.xpose.msra.mxu0 0.0
      %1292 = vmatpush.xpose.msra.mxu0 0.0
      %1293 = vmatpush.xpose.msra.mxu0 0.0
      %1294 = vmatpush.xpose.msra.mxu0 0.0
      %1295 = vmatpush.xpose.msra.mxu0 0.0
      %1296 = vmatpush.xpose.msra.mxu0 0.0
      %1297 = vmatpush.xpose.msra.mxu0 0.0
      %1298 = vmatpush.xpose.msra.mxu0 0.0
      %1299 = vmatpush.xpose.msra.mxu0 0.0
      %1300 = vmatpush.xpose.msra.mxu0 0.0
      %1301 = vmatpush.xpose.msra.mxu0 %v1284
      %1302 = vmatmul.f32.gmra.mxu0 %v1282
      %v1303 = vpop.f32.mrf.mxu0
      %v1304 = vadd.f32 0.0, %v1303
      %1305 = vdwg.mxu0
      %1307 = vrot.lane.b32.xlu0 %v1115, 120
      %v1308 = vpop.permute.xlu0 %1307
      %v1309 = vsel %vm741, %v1115, 0
      %v1311 = vsel %vm741, %v1308, 0
      %1313 = vmatpush.xpose.msra.mxu0 0.0
      %1314 = vmatpush.xpose.msra.mxu0 0.0
      %1315 = vmatpush.xpose.msra.mxu0 0.0
      %1316 = vmatpush.xpose.msra.mxu0 0.0
      %1317 = vmatpush.xpose.msra.mxu0 0.0
      %1318 = vmatpush.xpose.msra.mxu0 0.0
      %1319 = vmatpush.xpose.msra.mxu0 0.0
      %1320 = vmatpush.xpose.msra.mxu0 0.0
      %1321 = vmatpush.xpose.msra.mxu0 0.0
      %1322 = vmatpush.xpose.msra.mxu0 0.0
      %1323 = vmatpush.xpose.msra.mxu0 0.0
      %1324 = vmatpush.xpose.msra.mxu0 0.0
      %1325 = vmatpush.xpose.msra.mxu0 0.0
      %1326 = vmatpush.xpose.msra.mxu0 0.0
      %1327 = vmatpush.xpose.msra.mxu0 0.0
      %1328 = vmatpush.xpose.msra.mxu0 %v1311
      %1329 = vmatmul.f32.gmra.mxu0 %v1309
      %v1330 = vpop.f32.mrf.mxu0
      %v1331 = vadd.f32 0.0, %v1330
      %1332 = vdwg.mxu0
      %1334 = vrot.lane.b32.xlu0 %v1118, 120
      %v1335 = vpop.permute.xlu0 %1334
      %v1336 = vsel %vm741, %v1118, 0
      %v1338 = vsel %vm741, %v1335, 0
      %1340 = vmatpush.xpose.msra.mxu0 0.0
      %1341 = vmatpush.xpose.msra.mxu0 0.0
      %1342 = vmatpush.xpose.msra.mxu0 0.0
      %1343 = vmatpush.xpose.msra.mxu0 0.0
      %1344 = vmatpush.xpose.msra.mxu0 0.0
      %1345 = vmatpush.xpose.msra.mxu0 0.0
      %1346 = vmatpush.xpose.msra.mxu0 0.0
      %1347 = vmatpush.xpose.msra.mxu0 0.0
      %1348 = vmatpush.xpose.msra.mxu0 0.0
      %1349 = vmatpush.xpose.msra.mxu0 0.0
      %1350 = vmatpush.xpose.msra.mxu0 0.0
      %1351 = vmatpush.xpose.msra.mxu0 0.0
      %1352 = vmatpush.xpose.msra.mxu0 0.0
      %1353 = vmatpush.xpose.msra.mxu0 0.0
      %1354 = vmatpush.xpose.msra.mxu0 0.0
      %1355 = vmatpush.xpose.msra.mxu0 %v1338
      %1356 = vmatmul.f32.gmra.mxu0 %v1336
      %v1357 = vpop.f32.mrf.mxu0
      %v1358 = vadd.f32 0.0, %v1357
      %1359 = vdwg.mxu0
      %1361 = vrot.lane.b32.xlu0 %v1121, 120
      %v1362 = vpop.permute.xlu0 %1361
      %v1363 = vsel %vm741, %v1121, 0
      %v1365 = vsel %vm741, %v1362, 0
      %1367 = vmatpush.xpose.msra.mxu0 0.0
      %1368 = vmatpush.xpose.msra.mxu0 0.0
      %1369 = vmatpush.xpose.msra.mxu0 0.0
      %1370 = vmatpush.xpose.msra.mxu0 0.0
      %1371 = vmatpush.xpose.msra.mxu0 0.0
      %1372 = vmatpush.xpose.msra.mxu0 0.0
      %1373 = vmatpush.xpose.msra.mxu0 0.0
      %1374 = vmatpush.xpose.msra.mxu0 0.0
      %1375 = vmatpush.xpose.msra.mxu0 0.0
      %1376 = vmatpush.xpose.msra.mxu0 0.0
      %1377 = vmatpush.xpose.msra.mxu0 0.0
      %1378 = vmatpush.xpose.msra.mxu0 0.0
      %1379 = vmatpush.xpose.msra.mxu0 0.0
      %1380 = vmatpush.xpose.msra.mxu0 0.0
      %1381 = vmatpush.xpose.msra.mxu0 0.0
      %1382 = vmatpush.xpose.msra.mxu0 %v1365
      %1383 = vmatmul.f32.gmra.mxu0 %v1363
      %v1384 = vpop.f32.mrf.mxu0
      %v1385 = vadd.f32 0.0, %v1384
      %1386 = vdwg.mxu0
      %1388 = vrot.lane.b32.xlu0 %v1124, 120
      %v1389 = vpop.permute.xlu0 %1388
      %v1390 = vsel %vm741, %v1124, 0
      %v1392 = vsel %vm741, %v1389, 0
      %1394 = vmatpush.xpose.msra.mxu0 0.0
      %1395 = vmatpush.xpose.msra.mxu0 0.0
      %1396 = vmatpush.xpose.msra.mxu0 0.0
      %1397 = vmatpush.xpose.msra.mxu0 0.0
      %1398 = vmatpush.xpose.msra.mxu0 0.0
      %1399 = vmatpush.xpose.msra.mxu0 0.0
      %1400 = vmatpush.xpose.msra.mxu0 0.0
      %1401 = vmatpush.xpose.msra.mxu0 0.0
      %1402 = vmatpush.xpose.msra.mxu0 0.0
      %1403 = vmatpush.xpose.msra.mxu0 0.0
      %1404 = vmatpush.xpose.msra.mxu0 0.0
      %1405 = vmatpush.xpose.msra.mxu0 0.0
      %1406 = vmatpush.xpose.msra.mxu0 0.0
      %1407 = vmatpush.xpose.msra.mxu0 0.0
      %1408 = vmatpush.xpose.msra.mxu0 0.0
      %1409 = vmatpush.xpose.msra.mxu0 %v1392
      %1410 = vmatmul.f32.gmra.mxu0 %v1390
      %v1411 = vpop.f32.mrf.mxu0
      %v1412 = vadd.f32 0.0, %v1411
      %1413 = vdwg.mxu0
      %1415 = vrot.lane.b32.xlu0 %v1127, 120
      %v1416 = vpop.permute.xlu0 %1415
      %v1417 = vsel %vm741, %v1127, 0
      %v1419 = vsel %vm741, %v1416, 0
      %1421 = vmatpush.xpose.msra.mxu0 0.0
      %1422 = vmatpush.xpose.msra.mxu0 0.0
      %1423 = vmatpush.xpose.msra.mxu0 0.0
      %1424 = vmatpush.xpose.msra.mxu0 0.0
      %1425 = vmatpush.xpose.msra.mxu0 0.0
      %1426 = vmatpush.xpose.msra.mxu0 0.0
      %1427 = vmatpush.xpose.msra.mxu0 0.0
      %1428 = vmatpush.xpose.msra.mxu0 0.0
      %1429 = vmatpush.xpose.msra.mxu0 0.0
      %1430 = vmatpush.xpose.msra.mxu0 0.0
      %1431 = vmatpush.xpose.msra.mxu0 0.0
      %1432 = vmatpush.xpose.msra.mxu0 0.0
      %1433 = vmatpush.xpose.msra.mxu0 0.0
      %1434 = vmatpush.xpose.msra.mxu0 0.0
      %1435 = vmatpush.xpose.msra.mxu0 0.0
      %1436 = vmatpush.xpose.msra.mxu0 %v1419
      %1437 = vmatmul.f32.gmra.mxu0 %v1417
      %v1438 = vpop.f32.mrf.mxu0
      %v1439 = vadd.f32 0.0, %v1438
      %1440 = vdwg.mxu0
      %1442 = vrot.lane.b32.xlu0 %v1130, 120
      %v1443 = vpop.permute.xlu0 %1442
      %v1444 = vsel %vm741, %v1130, 0
      %v1446 = vsel %vm741, %v1443, 0
      %1448 = vmatpush.xpose.msra.mxu0 0.0
      %1449 = vmatpush.xpose.msra.mxu0 0.0
      %1450 = vmatpush.xpose.msra.mxu0 0.0
      %1451 = vmatpush.xpose.msra.mxu0 0.0
      %1452 = vmatpush.xpose.msra.mxu0 0.0
      %1453 = vmatpush.xpose.msra.mxu0 0.0
      %1454 = vmatpush.xpose.msra.mxu0 0.0
      %1455 = vmatpush.xpose.msra.mxu0 0.0
      %1456 = vmatpush.xpose.msra.mxu0 0.0
      %1457 = vmatpush.xpose.msra.mxu0 0.0
      %1458 = vmatpush.xpose.msra.mxu0 0.0
      %1459 = vmatpush.xpose.msra.mxu0 0.0
      %1460 = vmatpush.xpose.msra.mxu0 0.0
      %1461 = vmatpush.xpose.msra.mxu0 0.0
      %1462 = vmatpush.xpose.msra.mxu0 0.0
      %1463 = vmatpush.xpose.msra.mxu0 %v1446
      %1464 = vmatmul.f32.gmra.mxu0 %v1444
      %v1465 = vpop.f32.mrf.mxu0
      %v1466 = vadd.f32 0.0, %v1465
      %1467 = vdwg.mxu0
      %1469 = vrot.lane.b32.xlu0 %v1133, 120
      %v1470 = vpop.permute.xlu0 %1469
      %v1471 = vsel %vm741, %v1133, 0
      %v1473 = vsel %vm741, %v1470, 0
      %1475 = vmatpush.xpose.msra.mxu0 0.0
      %1476 = vmatpush.xpose.msra.mxu0 0.0
      %1477 = vmatpush.xpose.msra.mxu0 0.0
      %1478 = vmatpush.xpose.msra.mxu0 0.0
      %1479 = vmatpush.xpose.msra.mxu0 0.0
      %1480 = vmatpush.xpose.msra.mxu0 0.0
      %1481 = vmatpush.xpose.msra.mxu0 0.0
      %1482 = vmatpush.xpose.msra.mxu0 0.0
      %1483 = vmatpush.xpose.msra.mxu0 0.0
      %1484 = vmatpush.xpose.msra.mxu0 0.0
      %1485 = vmatpush.xpose.msra.mxu0 0.0
      %1486 = vmatpush.xpose.msra.mxu0 0.0
      %1487 = vmatpush.xpose.msra.mxu0 0.0
      %1488 = vmatpush.xpose.msra.mxu0 0.0
      %1489 = vmatpush.xpose.msra.mxu0 0.0
      %1490 = vmatpush.xpose.msra.mxu0 %v1473
      %1491 = vmatmul.f32.gmra.mxu0 %v1471
      %v1492 = vpop.f32.mrf.mxu0
      %v1493 = vadd.f32 0.0, %v1492
      %1494 = vdwg.mxu0
      %1496 = vrot.lane.b32.xlu0 %v1136, 120
      %v1497 = vpop.permute.xlu0 %1496
      %v1498 = vsel %vm741, %v1136, 0
      %v1500 = vsel %vm741, %v1497, 0
      %1502 = vmatpush.xpose.msra.mxu0 0.0
      %1503 = vmatpush.xpose.msra.mxu0 0.0
      %1504 = vmatpush.xpose.msra.mxu0 0.0
      %1505 = vmatpush.xpose.msra.mxu0 0.0
      %1506 = vmatpush.xpose.msra.mxu0 0.0
      %1507 = vmatpush.xpose.msra.mxu0 0.0
      %1508 = vmatpush.xpose.msra.mxu0 0.0
      %1509 = vmatpush.xpose.msra.mxu0 0.0
      %1510 = vmatpush.xpose.msra.mxu0 0.0
      %1511 = vmatpush.xpose.msra.mxu0 0.0
      %1512 = vmatpush.xpose.msra.mxu0 0.0
      %1513 = vmatpush.xpose.msra.mxu0 0.0
      %1514 = vmatpush.xpose.msra.mxu0 0.0
      %1515 = vmatpush.xpose.msra.mxu0 0.0
      %1516 = vmatpush.xpose.msra.mxu0 0.0
      %1517 = vmatpush.xpose.msra.mxu0 %v1500
      %1518 = vmatmul.f32.gmra.mxu0 %v1498
      %v1519 = vpop.f32.mrf.mxu0
      %v1520 = vadd.f32 0.0, %v1519
      %1521 = vdwg.mxu0
      %1523 = vrot.lane.b32.xlu0 %v1139, 120
      %v1524 = vpop.permute.xlu0 %1523
      %v1525 = vsel %vm741, %v1139, 0
      %v1527 = vsel %vm741, %v1524, 0
      %1529 = vmatpush.xpose.msra.mxu0 0.0
      %1530 = vmatpush.xpose.msra.mxu0 0.0
      %1531 = vmatpush.xpose.msra.mxu0 0.0
      %1532 = vmatpush.xpose.msra.mxu0 0.0
      %1533 = vmatpush.xpose.msra.mxu0 0.0
      %1534 = vmatpush.xpose.msra.mxu0 0.0
      %1535 = vmatpush.xpose.msra.mxu0 0.0
      %1536 = vmatpush.xpose.msra.mxu0 0.0
      %1537 = vmatpush.xpose.msra.mxu0 0.0
      %1538 = vmatpush.xpose.msra.mxu0 0.0
      %1539 = vmatpush.xpose.msra.mxu0 0.0
      %1540 = vmatpush.xpose.msra.mxu0 0.0
      %1541 = vmatpush.xpose.msra.mxu0 0.0
      %1542 = vmatpush.xpose.msra.mxu0 0.0
      %1543 = vmatpush.xpose.msra.mxu0 0.0
      %1544 = vmatpush.xpose.msra.mxu0 %v1527
      %1545 = vmatmul.f32.gmra.mxu0 %v1525
      %v1546 = vpop.f32.mrf.mxu0
      %v1547 = vadd.f32 0.0, %v1546
      %1548 = vdwg.mxu0
      %1550 = vrot.lane.b32.xlu0 %v1142, 120
      %v1551 = vpop.permute.xlu0 %1550
      %v1552 = vsel %vm741, %v1142, 0
      %v1554 = vsel %vm741, %v1551, 0
      %1556 = vmatpush.xpose.msra.mxu0 0.0
      %1557 = vmatpush.xpose.msra.mxu0 0.0
      %1558 = vmatpush.xpose.msra.mxu0 0.0
      %1559 = vmatpush.xpose.msra.mxu0 0.0
      %1560 = vmatpush.xpose.msra.mxu0 0.0
      %1561 = vmatpush.xpose.msra.mxu0 0.0
      %1562 = vmatpush.xpose.msra.mxu0 0.0
      %1563 = vmatpush.xpose.msra.mxu0 0.0
      %1564 = vmatpush.xpose.msra.mxu0 0.0
      %1565 = vmatpush.xpose.msra.mxu0 0.0
      %1566 = vmatpush.xpose.msra.mxu0 0.0
      %1567 = vmatpush.xpose.msra.mxu0 0.0
      %1568 = vmatpush.xpose.msra.mxu0 0.0
      %1569 = vmatpush.xpose.msra.mxu0 0.0
      %1570 = vmatpush.xpose.msra.mxu0 0.0
      %1571 = vmatpush.xpose.msra.mxu0 %v1554
      %1572 = vmatmul.f32.gmra.mxu0 %v1552
      %v1573 = vpop.f32.mrf.mxu0
      %v1574 = vadd.f32 0.0, %v1573
      %1575 = vdwg.mxu0
      %v1576 = vmul.f32 %v1169, 0.35355338
      %v1577 = vmul.f32 %v1196, 0.35355338
      %v1578 = vmul.f32 %v1223, 0.35355338
      %v1579 = vmul.f32 %v1250, 0.35355338
      %v1580 = vmul.f32 %v1277, 0.35355338
      %v1581 = vmul.f32 %v1304, 0.35355338
      %v1582 = vmul.f32 %v1331, 0.35355338
      %v1583 = vmul.f32 %v1358, 0.35355338
      %v1584 = vmul.f32 %v1385, 0.35355338
      %v1585 = vmul.f32 %v1412, 0.35355338
      %v1586 = vmul.f32 %v1439, 0.35355338
      %v1587 = vmul.f32 %v1466, 0.35355338
      %v1588 = vmul.f32 %v1493, 0.35355338
      %v1589 = vmul.f32 %v1520, 0.35355338
      %v1590 = vmul.f32 %v1547, 0.35355338
      %v1591 = vmul.f32 %v1574, 0.35355338
      %v1592 = vsel %vm741, %v1576, -inf
      %1593 = vmax.xlane.f32.xlu0 %v1592
      %v1594 = vpop.xlane.xlu0 %1593
      %v1595 = vsel %vm741, %v1577, -inf
      %1596 = vmax.xlane.f32.xlu0 %v1595
      %v1597 = vpop.xlane.xlu0 %1596
      %v1598 = vsel %vm741, %v1578, -inf
      %1599 = vmax.xlane.f32.xlu0 %v1598
      %v1600 = vpop.xlane.xlu0 %1599
      %v1601 = vsel %vm741, %v1579, -inf
      %1602 = vmax.xlane.f32.xlu0 %v1601
      %v1603 = vpop.xlane.xlu0 %1602
      %v1604 = vsel %vm741, %v1580, -inf
      %1605 = vmax.xlane.f32.xlu0 %v1604
      %v1606 = vpop.xlane.xlu0 %1605
      %v1607 = vsel %vm741, %v1581, -inf
      %1608 = vmax.xlane.f32.xlu0 %v1607
      %v1609 = vpop.xlane.xlu0 %1608
      %v1610 = vsel %vm741, %v1582, -inf
      %1611 = vmax.xlane.f32.xlu0 %v1610
      %v1612 = vpop.xlane.xlu0 %1611
      %v1613 = vsel %vm741, %v1583, -inf
      %1614 = vmax.xlane.f32.xlu0 %v1613
      %v1615 = vpop.xlane.xlu0 %1614
      %v1616 = vsel %vm741, %v1584, -inf
      %1617 = vmax.xlane.f32.xlu0 %v1616
      %v1618 = vpop.xlane.xlu0 %1617
      %v1619 = vsel %vm741, %v1585, -inf
      %1620 = vmax.xlane.f32.xlu0 %v1619
      %v1621 = vpop.xlane.xlu0 %1620
      %v1622 = vsel %vm741, %v1586, -inf
      %1623 = vmax.xlane.f32.xlu0 %v1622
      %v1624 = vpop.xlane.xlu0 %1623
      %v1625 = vsel %vm741, %v1587, -inf
      %1626 = vmax.xlane.f32.xlu0 %v1625
      %v1627 = vpop.xlane.xlu0 %1626
      %v1628 = vsel %vm741, %v1588, -inf
      %1629 = vmax.xlane.f32.xlu0 %v1628
      %v1630 = vpop.xlane.xlu0 %1629
      %v1631 = vsel %vm741, %v1589, -inf
      %1632 = vmax.xlane.f32.xlu0 %v1631
      %v1633 = vpop.xlane.xlu0 %1632
      %v1634 = vsel %vm741, %v1590, -inf
      %1635 = vmax.xlane.f32.xlu0 %v1634
      %v1636 = vpop.xlane.xlu0 %1635
      %v1637 = vsel %vm741, %v1591, -inf
      %1638 = vmax.xlane.f32.xlu0 %v1637
      %v1639 = vpop.xlane.xlu0 %1638
      %v1640 = vsub.f32 %v1576, %v1594
      %v1641 = vsub.f32 %v1577, %v1597
      %v1642 = vsub.f32 %v1578, %v1600
      %v1643 = vsub.f32 %v1579, %v1603
      %v1644 = vsub.f32 %v1580, %v1606
      %v1645 = vsub.f32 %v1581, %v1609
      %v1646 = vsub.f32 %v1582, %v1612
      %v1647 = vsub.f32 %v1583, %v1615
      %v1648 = vsub.f32 %v1584, %v1618
      %v1649 = vsub.f32 %v1585, %v1621
      %v1650 = vsub.f32 %v1586, %v1624
      %v1651 = vsub.f32 %v1587, %v1627
      %v1652 = vsub.f32 %v1588, %v1630
      %v1653 = vsub.f32 %v1589, %v1633
      %v1654 = vsub.f32 %v1590, %v1636
      %v1655 = vsub.f32 %v1591, %v1639
      %v1656 = vmul.f32 %v1640, 1.442695
      %v1657 = vpow.pop %v1656
      %v1658 = vmul.f32 %v1641, 1.442695
      %v1659 = vpow.pop %v1658
      %v1660 = vmul.f32 %v1642, 1.442695
      %v1661 = vpow.pop %v1660
      %v1662 = vmul.f32 %v1643, 1.442695
      %v1663 = vpow.pop %v1662
      %v1664 = vmul.f32 %v1644, 1.442695
      %v1665 = vpow.pop %v1664
      %v1666 = vmul.f32 %v1645, 1.442695
      %v1667 = vpow.pop %v1666
      %v1668 = vmul.f32 %v1646, 1.442695
      %v1669 = vpow.pop %v1668
      %v1670 = vmul.f32 %v1647, 1.442695
      %v1671 = vpow.pop %v1670
      %v1672 = vmul.f32 %v1648, 1.442695
      %v1673 = vpow.pop %v1672
      %v1674 = vmul.f32 %v1649, 1.442695
      %v1675 = vpow.pop %v1674
      %v1676 = vmul.f32 %v1650, 1.442695
      %v1677 = vpow.pop %v1676
      %v1678 = vmul.f32 %v1651, 1.442695
      %v1679 = vpow.pop %v1678
      %v1680 = vmul.f32 %v1652, 1.442695
      %v1681 = vpow.pop %v1680
      %v1682 = vmul.f32 %v1653, 1.442695
      %v1683 = vpow.pop %v1682
      %v1684 = vmul.f32 %v1654, 1.442695
      %v1685 = vpow.pop %v1684
      %v1686 = vmul.f32 %v1655, 1.442695
      %v1687 = vpow.pop %v1686
      %v1688 = vsel %vm741, %v1657, 0.0
      %1689 = vadd.xlane.f32.xlu0 %v1688
      %v1690 = vpop.xlane.xlu0 %1689
      %v1691 = vsel %vm741, %v1659, 0.0
      %1692 = vadd.xlane.f32.xlu0 %v1691
      %v1693 = vpop.xlane.xlu0 %1692
      %v1694 = vsel %vm741, %v1661, 0.0
      %1695 = vadd.xlane.f32.xlu0 %v1694
      %v1696 = vpop.xlane.xlu0 %1695
      %v1697 = vsel %vm741, %v1663, 0.0
      %1698 = vadd.xlane.f32.xlu0 %v1697
      %v1699 = vpop.xlane.xlu0 %1698
      %v1700 = vsel %vm741, %v1665, 0.0
      %1701 = vadd.xlane.f32.xlu0 %v1700
      %v1702 = vpop.xlane.xlu0 %1701
      %v1703 = vsel %vm741, %v1667, 0.0
      %1704 = vadd.xlane.f32.xlu0 %v1703
      %v1705 = vpop.xlane.xlu0 %1704
      %v1706 = vsel %vm741, %v1669, 0.0
      %1707 = vadd.xlane.f32.xlu0 %v1706
      %v1708 = vpop.xlane.xlu0 %1707
      %v1709 = vsel %vm741, %v1671, 0.0
      %1710 = vadd.xlane.f32.xlu0 %v1709
      %v1711 = vpop.xlane.xlu0 %1710
      %v1712 = vsel %vm741, %v1673, 0.0
      %1713 = vadd.xlane.f32.xlu0 %v1712
      %v1714 = vpop.xlane.xlu0 %1713
      %v1715 = vsel %vm741, %v1675, 0.0
      %1716 = vadd.xlane.f32.xlu0 %v1715
      %v1717 = vpop.xlane.xlu0 %1716
      %v1718 = vsel %vm741, %v1677, 0.0
      %1719 = vadd.xlane.f32.xlu0 %v1718
      %v1720 = vpop.xlane.xlu0 %1719
      %v1721 = vsel %vm741, %v1679, 0.0
      %1722 = vadd.xlane.f32.xlu0 %v1721
      %v1723 = vpop.xlane.xlu0 %1722
      %v1724 = vsel %vm741, %v1681, 0.0
      %1725 = vadd.xlane.f32.xlu0 %v1724
      %v1726 = vpop.xlane.xlu0 %1725
      %v1727 = vsel %vm741, %v1683, 0.0
      %1728 = vadd.xlane.f32.xlu0 %v1727
      %v1729 = vpop.xlane.xlu0 %1728
      %v1730 = vsel %vm741, %v1685, 0.0
      %1731 = vadd.xlane.f32.xlu0 %v1730
      %v1732 = vpop.xlane.xlu0 %1731
      %v1733 = vsel %vm741, %v1687, 0.0
      %1734 = vadd.xlane.f32.xlu0 %v1733
      %v1735 = vpop.xlane.xlu0 %1734
      %v1736 = vrcp.pop %v1690
      %v1737 = vrcp.pop %v1693
      %v1738 = vrcp.pop %v1696
      %v1739 = vrcp.pop %v1699
      %v1740 = vrcp.pop %v1702
      %v1741 = vrcp.pop %v1705
      %v1742 = vrcp.pop %v1708
      %v1743 = vrcp.pop %v1711
      %v1744 = vrcp.pop %v1714
      %v1745 = vrcp.pop %v1717
      %v1746 = vrcp.pop %v1720
      %v1747 = vrcp.pop %v1723
      %v1748 = vrcp.pop %v1726
      %v1749 = vrcp.pop %v1729
      %v1750 = vrcp.pop %v1732
      %v1751 = vrcp.pop %v1735
      %v1752 = vmul.f32 %v1657, %v1736
      %v1753 = vmul.f32 %v1659, %v1737
      %v1754 = vmul.f32 %v1661, %v1738
      %v1755 = vmul.f32 %v1663, %v1739
      %v1756 = vmul.f32 %v1665, %v1740
      %v1757 = vmul.f32 %v1667, %v1741
      %v1758 = vmul.f32 %v1669, %v1742
      %v1759 = vmul.f32 %v1671, %v1743
      %v1760 = vmul.f32 %v1673, %v1744
      %v1761 = vmul.f32 %v1675, %v1745
      %v1762 = vmul.f32 %v1677, %v1746
      %v1763 = vmul.f32 %v1679, %v1747
      %v1764 = vmul.f32 %v1681, %v1748
      %v1765 = vmul.f32 %v1683, %v1749
      %v1766 = vmul.f32 %v1685, %v1750
      %v1767 = vmul.f32 %v1687, %v1751
      %1768 = vrot.lane.b32.xlu0 %v1097, 112
      %v1769 = vpop.permute.xlu0 %1768
      %v1772 = vsel %vm741, %v1752, 0
      %1774 = vmatpush.msra.mxu0 0.0
      %1775 = vmatpush.msra.mxu0 0.0
      %1776 = vmatpush.msra.mxu0 0.0
      %1777 = vmatpush.msra.mxu0 0.0
      %1778 = vmatpush.msra.mxu0 0.0
      %1779 = vmatpush.msra.mxu0 0.0
      %1780 = vmatpush.msra.mxu0 0.0
      %1781 = vmatpush.msra.mxu0 0.0
      %1782 = vmatpush.msra.mxu0 0.0
      %1783 = vmatpush.msra.mxu0 0.0
      %1784 = vmatpush.msra.mxu0 0.0
      %1785 = vmatpush.msra.mxu0 0.0
      %1786 = vmatpush.msra.mxu0 0.0
      %1787 = vmatpush.msra.mxu0 0.0
      %1788 = vmatpush.msra.mxu0 0.0
      %1789 = vmatpush.msra.mxu0 %v1769
      %1790 = vmatmul.f32.gmra.mxu0 %v1772
      %v1791 = vpop.f32.mrf.mxu0
      %v1792 = vadd.f32 0.0, %v1791
      %1793 = vdwg.mxu0
      %1794 = vrot.lane.b32.xlu0 %v1100, 112
      %v1795 = vpop.permute.xlu0 %1794
      %v1798 = vsel %vm741, %v1753, 0
      %1800 = vmatpush.msra.mxu0 0.0
      %1801 = vmatpush.msra.mxu0 0.0
      %1802 = vmatpush.msra.mxu0 0.0
      %1803 = vmatpush.msra.mxu0 0.0
      %1804 = vmatpush.msra.mxu0 0.0
      %1805 = vmatpush.msra.mxu0 0.0
      %1806 = vmatpush.msra.mxu0 0.0
      %1807 = vmatpush.msra.mxu0 0.0
      %1808 = vmatpush.msra.mxu0 0.0
      %1809 = vmatpush.msra.mxu0 0.0
      %1810 = vmatpush.msra.mxu0 0.0
      %1811 = vmatpush.msra.mxu0 0.0
      %1812 = vmatpush.msra.mxu0 0.0
      %1813 = vmatpush.msra.mxu0 0.0
      %1814 = vmatpush.msra.mxu0 0.0
      %1815 = vmatpush.msra.mxu0 %v1795
      %1816 = vmatmul.f32.gmra.mxu0 %v1798
      %v1817 = vpop.f32.mrf.mxu0
      %v1818 = vadd.f32 0.0, %v1817
      %1819 = vdwg.mxu0
      %1820 = vrot.lane.b32.xlu0 %v1103, 112
      %v1821 = vpop.permute.xlu0 %1820
      %v1824 = vsel %vm741, %v1754, 0
      %1826 = vmatpush.msra.mxu0 0.0
      %1827 = vmatpush.msra.mxu0 0.0
      %1828 = vmatpush.msra.mxu0 0.0
      %1829 = vmatpush.msra.mxu0 0.0
      %1830 = vmatpush.msra.mxu0 0.0
      %1831 = vmatpush.msra.mxu0 0.0
      %1832 = vmatpush.msra.mxu0 0.0
      %1833 = vmatpush.msra.mxu0 0.0
      %1834 = vmatpush.msra.mxu0 0.0
      %1835 = vmatpush.msra.mxu0 0.0
      %1836 = vmatpush.msra.mxu0 0.0
      %1837 = vmatpush.msra.mxu0 0.0
      %1838 = vmatpush.msra.mxu0 0.0
      %1839 = vmatpush.msra.mxu0 0.0
      %1840 = vmatpush.msra.mxu0 0.0
      %1841 = vmatpush.msra.mxu0 %v1821
      %1842 = vmatmul.f32.gmra.mxu0 %v1824
      %v1843 = vpop.f32.mrf.mxu0
      %v1844 = vadd.f32 0.0, %v1843
      %1845 = vdwg.mxu0
      %1846 = vrot.lane.b32.xlu0 %v1106, 112
      %v1847 = vpop.permute.xlu0 %1846
      %v1850 = vsel %vm741, %v1755, 0
      %1852 = vmatpush.msra.mxu0 0.0
      %1853 = vmatpush.msra.mxu0 0.0
      %1854 = vmatpush.msra.mxu0 0.0
      %1855 = vmatpush.msra.mxu0 0.0
      %1856 = vmatpush.msra.mxu0 0.0
      %1857 = vmatpush.msra.mxu0 0.0
      %1858 = vmatpush.msra.mxu0 0.0
      %1859 = vmatpush.msra.mxu0 0.0
      %1860 = vmatpush.msra.mxu0 0.0
      %1861 = vmatpush.msra.mxu0 0.0
      %1862 = vmatpush.msra.mxu0 0.0
      %1863 = vmatpush.msra.mxu0 0.0
      %1864 = vmatpush.msra.mxu0 0.0
      %1865 = vmatpush.msra.mxu0 0.0
      %1866 = vmatpush.msra.mxu0 0.0
      %1867 = vmatpush.msra.mxu0 %v1847
      %1868 = vmatmul.f32.gmra.mxu0 %v1850
      %v1869 = vpop.f32.mrf.mxu0
      %v1870 = vadd.f32 0.0, %v1869
      %1871 = vdwg.mxu0
      %1872 = vrot.lane.b32.xlu0 %v1109, 112
      %v1873 = vpop.permute.xlu0 %1872
      %v1876 = vsel %vm741, %v1756, 0
      %1878 = vmatpush.msra.mxu0 0.0
      %1879 = vmatpush.msra.mxu0 0.0
      %1880 = vmatpush.msra.mxu0 0.0
      %1881 = vmatpush.msra.mxu0 0.0
      %1882 = vmatpush.msra.mxu0 0.0
      %1883 = vmatpush.msra.mxu0 0.0
      %1884 = vmatpush.msra.mxu0 0.0
      %1885 = vmatpush.msra.mxu0 0.0
      %1886 = vmatpush.msra.mxu0 0.0
      %1887 = vmatpush.msra.mxu0 0.0
      %1888 = vmatpush.msra.mxu0 0.0
      %1889 = vmatpush.msra.mxu0 0.0
      %1890 = vmatpush.msra.mxu0 0.0
      %1891 = vmatpush.msra.mxu0 0.0
      %1892 = vmatpush.msra.mxu0 0.0
      %1893 = vmatpush.msra.mxu0 %v1873
      %1894 = vmatmul.f32.gmra.mxu0 %v1876
      %v1895 = vpop.f32.mrf.mxu0
      %v1896 = vadd.f32 0.0, %v1895
      %1897 = vdwg.mxu0
      %1898 = vrot.lane.b32.xlu0 %v1112, 112
      %v1899 = vpop.permute.xlu0 %1898
      %v1902 = vsel %vm741, %v1757, 0
      %1904 = vmatpush.msra.mxu0 0.0
      %1905 = vmatpush.msra.mxu0 0.0
      %1906 = vmatpush.msra.mxu0 0.0
      %1907 = vmatpush.msra.mxu0 0.0
      %1908 = vmatpush.msra.mxu0 0.0
      %1909 = vmatpush.msra.mxu0 0.0
      %1910 = vmatpush.msra.mxu0 0.0
      %1911 = vmatpush.msra.mxu0 0.0
      %1912 = vmatpush.msra.mxu0 0.0
      %1913 = vmatpush.msra.mxu0 0.0
      %1914 = vmatpush.msra.mxu0 0.0
      %1915 = vmatpush.msra.mxu0 0.0
      %1916 = vmatpush.msra.mxu0 0.0
      %1917 = vmatpush.msra.mxu0 0.0
      %1918 = vmatpush.msra.mxu0 0.0
      %1919 = vmatpush.msra.mxu0 %v1899
      %1920 = vmatmul.f32.gmra.mxu0 %v1902
      %v1921 = vpop.f32.mrf.mxu0
      %v1922 = vadd.f32 0.0, %v1921
      %1923 = vdwg.mxu0
      %1924 = vrot.lane.b32.xlu0 %v1115, 112
      %v1925 = vpop.permute.xlu0 %1924
      %v1928 = vsel %vm741, %v1758, 0
      %1930 = vmatpush.msra.mxu0 0.0
      %1931 = vmatpush.msra.mxu0 0.0
      %1932 = vmatpush.msra.mxu0 0.0
      %1933 = vmatpush.msra.mxu0 0.0
      %1934 = vmatpush.msra.mxu0 0.0
      %1935 = vmatpush.msra.mxu0 0.0
      %1936 = vmatpush.msra.mxu0 0.0
      %1937 = vmatpush.msra.mxu0 0.0
      %1938 = vmatpush.msra.mxu0 0.0
      %1939 = vmatpush.msra.mxu0 0.0
      %1940 = vmatpush.msra.mxu0 0.0
      %1941 = vmatpush.msra.mxu0 0.0
      %1942 = vmatpush.msra.mxu0 0.0
      %1943 = vmatpush.msra.mxu0 0.0
      %1944 = vmatpush.msra.mxu0 0.0
      %1945 = vmatpush.msra.mxu0 %v1925
      %1946 = vmatmul.f32.gmra.mxu0 %v1928
      %v1947 = vpop.f32.mrf.mxu0
      %v1948 = vadd.f32 0.0, %v1947
      %1949 = vdwg.mxu0
      %1950 = vrot.lane.b32.xlu0 %v1118, 112
      %v1951 = vpop.permute.xlu0 %1950
      %v1954 = vsel %vm741, %v1759, 0
      %1956 = vmatpush.msra.mxu0 0.0
      %1957 = vmatpush.msra.mxu0 0.0
      %1958 = vmatpush.msra.mxu0 0.0
      %1959 = vmatpush.msra.mxu0 0.0
      %1960 = vmatpush.msra.mxu0 0.0
      %1961 = vmatpush.msra.mxu0 0.0
      %1962 = vmatpush.msra.mxu0 0.0
      %1963 = vmatpush.msra.mxu0 0.0
      %1964 = vmatpush.msra.mxu0 0.0
      %1965 = vmatpush.msra.mxu0 0.0
      %1966 = vmatpush.msra.mxu0 0.0
      %1967 = vmatpush.msra.mxu0 0.0
      %1968 = vmatpush.msra.mxu0 0.0
      %1969 = vmatpush.msra.mxu0 0.0
      %1970 = vmatpush.msra.mxu0 0.0
      %1971 = vmatpush.msra.mxu0 %v1951
      %1972 = vmatmul.f32.gmra.mxu0 %v1954
      %v1973 = vpop.f32.mrf.mxu0
      %v1974 = vadd.f32 0.0, %v1973
      %1975 = vdwg.mxu0
      %1976 = vrot.lane.b32.xlu0 %v1121, 112
      %v1977 = vpop.permute.xlu0 %1976
      %v1980 = vsel %vm741, %v1760, 0
      %1982 = vmatpush.msra.mxu0 0.0
      %1983 = vmatpush.msra.mxu0 0.0
      %1984 = vmatpush.msra.mxu0 0.0
      %1985 = vmatpush.msra.mxu0 0.0
      %1986 = vmatpush.msra.mxu0 0.0
      %1987 = vmatpush.msra.mxu0 0.0
      %1988 = vmatpush.msra.mxu0 0.0
      %1989 = vmatpush.msra.mxu0 0.0
      %1990 = vmatpush.msra.mxu0 0.0
      %1991 = vmatpush.msra.mxu0 0.0
      %1992 = vmatpush.msra.mxu0 0.0
      %1993 = vmatpush.msra.mxu0 0.0
      %1994 = vmatpush.msra.mxu0 0.0
      %1995 = vmatpush.msra.mxu0 0.0
      %1996 = vmatpush.msra.mxu0 0.0
      %1997 = vmatpush.msra.mxu0 %v1977
      %1998 = vmatmul.f32.gmra.mxu0 %v1980
      %v1999 = vpop.f32.mrf.mxu0
      %v2000 = vadd.f32 0.0, %v1999
      %2001 = vdwg.mxu0
      %2002 = vrot.lane.b32.xlu0 %v1124, 112
      %v2003 = vpop.permute.xlu0 %2002
      %v2006 = vsel %vm741, %v1761, 0
      %2008 = vmatpush.msra.mxu0 0.0
      %2009 = vmatpush.msra.mxu0 0.0
      %2010 = vmatpush.msra.mxu0 0.0
      %2011 = vmatpush.msra.mxu0 0.0
      %2012 = vmatpush.msra.mxu0 0.0
      %2013 = vmatpush.msra.mxu0 0.0
      %2014 = vmatpush.msra.mxu0 0.0
      %2015 = vmatpush.msra.mxu0 0.0
      %2016 = vmatpush.msra.mxu0 0.0
      %2017 = vmatpush.msra.mxu0 0.0
      %2018 = vmatpush.msra.mxu0 0.0
      %2019 = vmatpush.msra.mxu0 0.0
      %2020 = vmatpush.msra.mxu0 0.0
      %2021 = vmatpush.msra.mxu0 0.0
      %2022 = vmatpush.msra.mxu0 0.0
      %2023 = vmatpush.msra.mxu0 %v2003
      %2024 = vmatmul.f32.gmra.mxu0 %v2006
      %v2025 = vpop.f32.mrf.mxu0
      %v2026 = vadd.f32 0.0, %v2025
      %2027 = vdwg.mxu0
      %2028 = vrot.lane.b32.xlu0 %v1127, 112
      %v2029 = vpop.permute.xlu0 %2028
      %v2032 = vsel %vm741, %v1762, 0
      %2034 = vmatpush.msra.mxu0 0.0
      %2035 = vmatpush.msra.mxu0 0.0
      %2036 = vmatpush.msra.mxu0 0.0
      %2037 = vmatpush.msra.mxu0 0.0
      %2038 = vmatpush.msra.mxu0 0.0
      %2039 = vmatpush.msra.mxu0 0.0
      %2040 = vmatpush.msra.mxu0 0.0
      %2041 = vmatpush.msra.mxu0 0.0
      %2042 = vmatpush.msra.mxu0 0.0
      %2043 = vmatpush.msra.mxu0 0.0
      %2044 = vmatpush.msra.mxu0 0.0
      %2045 = vmatpush.msra.mxu0 0.0
      %2046 = vmatpush.msra.mxu0 0.0
      %2047 = vmatpush.msra.mxu0 0.0
      %2048 = vmatpush.msra.mxu0 0.0
      %2049 = vmatpush.msra.mxu0 %v2029
      %2050 = vmatmul.f32.gmra.mxu0 %v2032
      %v2051 = vpop.f32.mrf.mxu0
      %v2052 = vadd.f32 0.0, %v2051
      %2053 = vdwg.mxu0
      %2054 = vrot.lane.b32.xlu0 %v1130, 112
      %v2055 = vpop.permute.xlu0 %2054
      %v2058 = vsel %vm741, %v1763, 0
      %2060 = vmatpush.msra.mxu0 0.0
      %2061 = vmatpush.msra.mxu0 0.0
      %2062 = vmatpush.msra.mxu0 0.0
      %2063 = vmatpush.msra.mxu0 0.0
      %2064 = vmatpush.msra.mxu0 0.0
      %2065 = vmatpush.msra.mxu0 0.0
      %2066 = vmatpush.msra.mxu0 0.0
      %2067 = vmatpush.msra.mxu0 0.0
      %2068 = vmatpush.msra.mxu0 0.0
      %2069 = vmatpush.msra.mxu0 0.0
      %2070 = vmatpush.msra.mxu0 0.0
      %2071 = vmatpush.msra.mxu0 0.0
      %2072 = vmatpush.msra.mxu0 0.0
      %2073 = vmatpush.msra.mxu0 0.0
      %2074 = vmatpush.msra.mxu0 0.0
      %2075 = vmatpush.msra.mxu0 %v2055
      %2076 = vmatmul.f32.gmra.mxu0 %v2058
      %v2077 = vpop.f32.mrf.mxu0
      %v2078 = vadd.f32 0.0, %v2077
      %2079 = vdwg.mxu0
      %2080 = vrot.lane.b32.xlu0 %v1133, 112
      %v2081 = vpop.permute.xlu0 %2080
      %v2084 = vsel %vm741, %v1764, 0
      %2086 = vmatpush.msra.mxu0 0.0
      %2087 = vmatpush.msra.mxu0 0.0
      %2088 = vmatpush.msra.mxu0 0.0
      %2089 = vmatpush.msra.mxu0 0.0
      %2090 = vmatpush.msra.mxu0 0.0
      %2091 = vmatpush.msra.mxu0 0.0
      %2092 = vmatpush.msra.mxu0 0.0
      %2093 = vmatpush.msra.mxu0 0.0
      %2094 = vmatpush.msra.mxu0 0.0
      %2095 = vmatpush.msra.mxu0 0.0
      %2096 = vmatpush.msra.mxu0 0.0
      %2097 = vmatpush.msra.mxu0 0.0
      %2098 = vmatpush.msra.mxu0 0.0
      %2099 = vmatpush.msra.mxu0 0.0
      %2100 = vmatpush.msra.mxu0 0.0
      %2101 = vmatpush.msra.mxu0 %v2081
      %2102 = vmatmul.f32.gmra.mxu0 %v2084
      %v2103 = vpop.f32.mrf.mxu0
      %v2104 = vadd.f32 0.0, %v2103
      %2105 = vdwg.mxu0
      %2106 = vrot.lane.b32.xlu0 %v1136, 112
      %v2107 = vpop.permute.xlu0 %2106
      %v2110 = vsel %vm741, %v1765, 0
      %2112 = vmatpush.msra.mxu0 0.0
      %2113 = vmatpush.msra.mxu0 0.0
      %2114 = vmatpush.msra.mxu0 0.0
      %2115 = vmatpush.msra.mxu0 0.0
      %2116 = vmatpush.msra.mxu0 0.0
      %2117 = vmatpush.msra.mxu0 0.0
      %2118 = vmatpush.msra.mxu0 0.0
      %2119 = vmatpush.msra.mxu0 0.0
      %2120 = vmatpush.msra.mxu0 0.0
      %2121 = vmatpush.msra.mxu0 0.0
      %2122 = vmatpush.msra.mxu0 0.0
      %2123 = vmatpush.msra.mxu0 0.0
      %2124 = vmatpush.msra.mxu0 0.0
      %2125 = vmatpush.msra.mxu0 0.0
      %2126 = vmatpush.msra.mxu0 0.0
      %2127 = vmatpush.msra.mxu0 %v2107
      %2128 = vmatmul.f32.gmra.mxu0 %v2110
      %v2129 = vpop.f32.mrf.mxu0
      %v2130 = vadd.f32 0.0, %v2129
      %2131 = vdwg.mxu0
      %2132 = vrot.lane.b32.xlu0 %v1139, 112
      %v2133 = vpop.permute.xlu0 %2132
      %v2136 = vsel %vm741, %v1766, 0
      %2138 = vmatpush.msra.mxu0 0.0
      %2139 = vmatpush.msra.mxu0 0.0
      %2140 = vmatpush.msra.mxu0 0.0
      %2141 = vmatpush.msra.mxu0 0.0
      %2142 = vmatpush.msra.mxu0 0.0
      %2143 = vmatpush.msra.mxu0 0.0
      %2144 = vmatpush.msra.mxu0 0.0
      %2145 = vmatpush.msra.mxu0 0.0
      %2146 = vmatpush.msra.mxu0 0.0
      %2147 = vmatpush.msra.mxu0 0.0
      %2148 = vmatpush.msra.mxu0 0.0
      %2149 = vmatpush.msra.mxu0 0.0
      %2150 = vmatpush.msra.mxu0 0.0
      %2151 = vmatpush.msra.mxu0 0.0
      %2152 = vmatpush.msra.mxu0 0.0
      %2153 = vmatpush.msra.mxu0 %v2133
      %2154 = vmatmul.f32.gmra.mxu0 %v2136
      %v2155 = vpop.f32.mrf.mxu0
      %v2156 = vadd.f32 0.0, %v2155
      %2157 = vdwg.mxu0
      %2158 = vrot.lane.b32.xlu0 %v1142, 112
      %v2159 = vpop.permute.xlu0 %2158
      %v2162 = vsel %vm741, %v1767, 0
      %2164 = vmatpush.msra.mxu0 0.0
      %2165 = vmatpush.msra.mxu0 0.0
      %2166 = vmatpush.msra.mxu0 0.0
      %2167 = vmatpush.msra.mxu0 0.0
      %2168 = vmatpush.msra.mxu0 0.0
      %2169 = vmatpush.msra.mxu0 0.0
      %2170 = vmatpush.msra.mxu0 0.0
      %2171 = vmatpush.msra.mxu0 0.0
      %2172 = vmatpush.msra.mxu0 0.0
      %2173 = vmatpush.msra.mxu0 0.0
      %2174 = vmatpush.msra.mxu0 0.0
      %2175 = vmatpush.msra.mxu0 0.0
      %2176 = vmatpush.msra.mxu0 0.0
      %2177 = vmatpush.msra.mxu0 0.0
      %2178 = vmatpush.msra.mxu0 0.0
      %2179 = vmatpush.msra.mxu0 %v2159
      %2180 = vmatmul.f32.gmra.mxu0 %v2162
      %v2181 = vpop.f32.mrf.mxu0
      %v2182 = vadd.f32 0.0, %v2181
      %2183 = vdwg.mxu0
      %v2184 = vsel %vm741, %v1792, -inf
      %2185 = vmax.xlane.f32.xlu0 %v2184
      %v2186 = vpop.xlane.xlu0 %2185
      %v2187 = vsel %vm741, %v1818, -inf
      %2188 = vmax.xlane.f32.xlu0 %v2187
      %v2189 = vpop.xlane.xlu0 %2188
      %v2190 = vsel %vm741, %v1844, -inf
      %2191 = vmax.xlane.f32.xlu0 %v2190
      %v2192 = vpop.xlane.xlu0 %2191
      %v2193 = vsel %vm741, %v1870, -inf
      %2194 = vmax.xlane.f32.xlu0 %v2193
      %v2195 = vpop.xlane.xlu0 %2194
      %v2196 = vsel %vm741, %v1896, -inf
      %2197 = vmax.xlane.f32.xlu0 %v2196
      %v2198 = vpop.xlane.xlu0 %2197
      %v2199 = vsel %vm741, %v1922, -inf
      %2200 = vmax.xlane.f32.xlu0 %v2199
      %v2201 = vpop.xlane.xlu0 %2200
      %v2202 = vsel %vm741, %v1948, -inf
      %2203 = vmax.xlane.f32.xlu0 %v2202
      %v2204 = vpop.xlane.xlu0 %2203
      %v2205 = vsel %vm741, %v1974, -inf
      %2206 = vmax.xlane.f32.xlu0 %v2205
      %v2207 = vpop.xlane.xlu0 %2206
      %v2208 = vsel %vm741, %v2000, -inf
      %2209 = vmax.xlane.f32.xlu0 %v2208
      %v2210 = vpop.xlane.xlu0 %2209
      %v2211 = vsel %vm741, %v2026, -inf
      %2212 = vmax.xlane.f32.xlu0 %v2211
      %v2213 = vpop.xlane.xlu0 %2212
      %v2214 = vsel %vm741, %v2052, -inf
      %2215 = vmax.xlane.f32.xlu0 %v2214
      %v2216 = vpop.xlane.xlu0 %2215
      %v2217 = vsel %vm741, %v2078, -inf
      %2218 = vmax.xlane.f32.xlu0 %v2217
      %v2219 = vpop.xlane.xlu0 %2218
      %v2220 = vsel %vm741, %v2104, -inf
      %2221 = vmax.xlane.f32.xlu0 %v2220
      %v2222 = vpop.xlane.xlu0 %2221
      %v2223 = vsel %vm741, %v2130, -inf
      %2224 = vmax.xlane.f32.xlu0 %v2223
      %v2225 = vpop.xlane.xlu0 %2224
      %v2226 = vsel %vm741, %v2156, -inf
      %2227 = vmax.xlane.f32.xlu0 %v2226
      %v2228 = vpop.xlane.xlu0 %2227
      %v2229 = vsel %vm741, %v2182, -inf
      %2230 = vmax.xlane.f32.xlu0 %v2229
      %v2231 = vpop.xlane.xlu0 %2230
      %v2232 = vsub.f32 %v1792, %v2186
      %v2233 = vsub.f32 %v1818, %v2189
      %v2234 = vsub.f32 %v1844, %v2192
      %v2235 = vsub.f32 %v1870, %v2195
      %v2236 = vsub.f32 %v1896, %v2198
      %v2237 = vsub.f32 %v1922, %v2201
      %v2238 = vsub.f32 %v1948, %v2204
      %v2239 = vsub.f32 %v1974, %v2207
      %v2240 = vsub.f32 %v2000, %v2210
      %v2241 = vsub.f32 %v2026, %v2213
      %v2242 = vsub.f32 %v2052, %v2216
      %v2243 = vsub.f32 %v2078, %v2219
      %v2244 = vsub.f32 %v2104, %v2222
      %v2245 = vsub.f32 %v2130, %v2225
      %v2246 = vsub.f32 %v2156, %v2228
      %v2247 = vsub.f32 %v2182, %v2231
      %v2248 = vmul.f32 %v2232, 1.442695
      %v2249 = vpow.pop %v2248
      %v2250 = vmul.f32 %v2233, 1.442695
      %v2251 = vpow.pop %v2250
      %v2252 = vmul.f32 %v2234, 1.442695
      %v2253 = vpow.pop %v2252
      %v2254 = vmul.f32 %v2235, 1.442695
      %v2255 = vpow.pop %v2254
      %v2256 = vmul.f32 %v2236, 1.442695
      %v2257 = vpow.pop %v2256
      %v2258 = vmul.f32 %v2237, 1.442695
      %v2259 = vpow.pop %v2258
      %v2260 = vmul.f32 %v2238, 1.442695
      %v2261 = vpow.pop %v2260
      %v2262 = vmul.f32 %v2239, 1.442695
      %v2263 = vpow.pop %v2262
      %v2264 = vmul.f32 %v2240, 1.442695
      %v2265 = vpow.pop %v2264
      %v2266 = vmul.f32 %v2241, 1.442695
      %v2267 = vpow.pop %v2266
      %v2268 = vmul.f32 %v2242, 1.442695
      %v2269 = vpow.pop %v2268
      %v2270 = vmul.f32 %v2243, 1.442695
      %v2271 = vpow.pop %v2270
      %v2272 = vmul.f32 %v2244, 1.442695
      %v2273 = vpow.pop %v2272
      %v2274 = vmul.f32 %v2245, 1.442695
      %v2275 = vpow.pop %v2274
      %v2276 = vmul.f32 %v2246, 1.442695
      %v2277 = vpow.pop %v2276
      %v2278 = vmul.f32 %v2247, 1.442695
      %v2279 = vpow.pop %v2278
      %v2280 = vsel %vm741, %v2249, 0.0
      %2281 = vadd.xlane.f32.xlu0 %v2280
      %v2282 = vpop.xlane.xlu0 %2281
      %v2283 = vsel %vm741, %v2251, 0.0
      %2284 = vadd.xlane.f32.xlu0 %v2283
      %v2285 = vpop.xlane.xlu0 %2284
      %v2286 = vsel %vm741, %v2253, 0.0
      %2287 = vadd.xlane.f32.xlu0 %v2286
      %v2288 = vpop.xlane.xlu0 %2287
      %v2289 = vsel %vm741, %v2255, 0.0
      %2290 = vadd.xlane.f32.xlu0 %v2289
      %v2291 = vpop.xlane.xlu0 %2290
      %v2292 = vsel %vm741, %v2257, 0.0
      %2293 = vadd.xlane.f32.xlu0 %v2292
      %v2294 = vpop.xlane.xlu0 %2293
      %v2295 = vsel %vm741, %v2259, 0.0
      %2296 = vadd.xlane.f32.xlu0 %v2295
      %v2297 = vpop.xlane.xlu0 %2296
      %v2298 = vsel %vm741, %v2261, 0.0
      %2299 = vadd.xlane.f32.xlu0 %v2298
      %v2300 = vpop.xlane.xlu0 %2299
      %v2301 = vsel %vm741, %v2263, 0.0
      %2302 = vadd.xlane.f32.xlu0 %v2301
      %v2303 = vpop.xlane.xlu0 %2302
      %v2304 = vsel %vm741, %v2265, 0.0
      %2305 = vadd.xlane.f32.xlu0 %v2304
      %v2306 = vpop.xlane.xlu0 %2305
      %v2307 = vsel %vm741, %v2267, 0.0
      %2308 = vadd.xlane.f32.xlu0 %v2307
      %v2309 = vpop.xlane.xlu0 %2308
      %v2310 = vsel %vm741, %v2269, 0.0
      %2311 = vadd.xlane.f32.xlu0 %v2310
      %v2312 = vpop.xlane.xlu0 %2311
      %v2313 = vsel %vm741, %v2271, 0.0
      %2314 = vadd.xlane.f32.xlu0 %v2313
      %v2315 = vpop.xlane.xlu0 %2314
      %v2316 = vsel %vm741, %v2273, 0.0
      %2317 = vadd.xlane.f32.xlu0 %v2316
      %v2318 = vpop.xlane.xlu0 %2317
      %v2319 = vsel %vm741, %v2275, 0.0
      %2320 = vadd.xlane.f32.xlu0 %v2319
      %v2321 = vpop.xlane.xlu0 %2320
      %v2322 = vsel %vm741, %v2277, 0.0
      %2323 = vadd.xlane.f32.xlu0 %v2322
      %v2324 = vpop.xlane.xlu0 %2323
      %v2325 = vsel %vm741, %v2279, 0.0
      %2326 = vadd.xlane.f32.xlu0 %v2325
      %v2327 = vpop.xlane.xlu0 %2326
      %v2328 = vrcp.pop %v2282
      %v2329 = vrcp.pop %v2285
      %v2330 = vrcp.pop %v2288
      %v2331 = vrcp.pop %v2291
      %v2332 = vrcp.pop %v2294
      %v2333 = vrcp.pop %v2297
      %v2334 = vrcp.pop %v2300
      %v2335 = vrcp.pop %v2303
      %v2336 = vrcp.pop %v2306
      %v2337 = vrcp.pop %v2309
      %v2338 = vrcp.pop %v2312
      %v2339 = vrcp.pop %v2315
      %v2340 = vrcp.pop %v2318
      %v2341 = vrcp.pop %v2321
      %v2342 = vrcp.pop %v2324
      %v2343 = vrcp.pop %v2327
      %v2344 = vmul.f32 %v2249, %v2328
      %v2345 = vmul.f32 %v2251, %v2329
      %v2346 = vmul.f32 %v2253, %v2330
      %v2347 = vmul.f32 %v2255, %v2331
      %v2348 = vmul.f32 %v2257, %v2332
      %v2349 = vmul.f32 %v2259, %v2333
      %v2350 = vmul.f32 %v2261, %v2334
      %v2351 = vmul.f32 %v2263, %v2335
      %v2352 = vmul.f32 %v2265, %v2336
      %v2353 = vmul.f32 %v2267, %v2337
      %v2354 = vmul.f32 %v2269, %v2338
      %v2355 = vmul.f32 %v2271, %v2339
      %v2356 = vmul.f32 %v2273, %v2340
      %v2357 = vmul.f32 %v2275, %v2341
      %v2358 = vmul.f32 %v2277, %v2342
      %v2359 = vmul.f32 %v2279, %v2343
      %2360 = vst.msk [vmem:[%s334] sm:$0xff] %vm741, %v2344
      %2361 = vst.msk [vmem:[%s334 + $0x8] sm:$0xff] %vm741, %v2345
      %2362 = vst.msk [vmem:[%s334 + $0x10] sm:$0xff] %vm741, %v2346
      %2363 = vst.msk [vmem:[%s334 + $0x18] sm:$0xff] %vm741, %v2347
      %2364 = vst.msk [vmem:[%s334 + $0x20] sm:$0xff] %vm741, %v2348
      %2365 = vst.msk [vmem:[%s334 + $0x28] sm:$0xff] %vm741, %v2349
      %2366 = vst.msk [vmem:[%s334 + $0x30] sm:$0xff] %vm741, %v2350
      %2367 = vst.msk [vmem:[%s334 + $0x38] sm:$0xff] %vm741, %v2351
      %2368 = vst.msk [vmem:[%s334 + $0x40] sm:$0xff] %vm741, %v2352
      %2369 = vst.msk [vmem:[%s334 + $0x48] sm:$0xff] %vm741, %v2353
      %2370 = vst.msk [vmem:[%s334 + $0x50] sm:$0xff] %vm741, %v2354
      %2371 = vst.msk [vmem:[%s334 + $0x58] sm:$0xff] %vm741, %v2355
      %2372 = vst.msk [vmem:[%s334 + $0x60] sm:$0xff] %vm741, %v2356
      %2373 = vst.msk [vmem:[%s334 + $0x68] sm:$0xff] %vm741, %v2357
      %2374 = vst.msk [vmem:[%s334 + $0x70] sm:$0xff] %vm741, %v2358
      %2375 = vst.msk [vmem:[%s334 + $0x78] sm:$0xff] %vm741, %v2359
      %s2376 = smul.u32 16, %s20
      %p2377 = scmp.lt.s32.totalorder %s2376, 31
      %s2378 = scalar_select %p2377, %s2376, 31
      %s2379 = smul.addr %s2378, 8
      %s2380 = scalar_lea.vmem %s9, %s2379
      // Predicated region
      $region57: #{tpu_custom_call.1} parent=55 // pred_check
        %p2381 = pneg %p232
      $region58: #{tpu_custom_call.1} parent=55 // pred_check_branch
        %2383 = sbr.rel (%p2381) target = $region60
      $region59: #{tpu_custom_call.1} parent=55 // pred_region
        %s2384 = smul.u32 16, %s20
      $region60: #{tpu_custom_call.1} parent=55 // pred_fallthru
        _
    $region56: #{tpu_custom_call.1} parent=5 // pred_fallthru
      _
    %p2385 = scmp.le.s32.totalorder 2, %s15
    // Predicated region
    $region61: #{tpu_custom_call.1} parent=5 // pred_check
      %p2386 = pneg %p2385
    $region62: #{tpu_custom_call.1} parent=5 // pred_check_branch
      %2388 = sbr.rel (%p2386) target = $region64
    $region63: #{tpu_custom_call.1} parent=5 // pred_region
      %s2389 = ssub.s32 %s15, 2
      // Predicated region
      $region65: #{tpu_custom_call.1} parent=63 // pred_check
        %p2390 = pneg %p238
      $region66: #{tpu_custom_call.1} parent=63 // pred_check_branch
        %2392 = sbr.rel (%p2390) target = $region68
      $region67: #{tpu_custom_call.1} parent=63 // pred_region
        %s2393 = smul.u32 16, %s21
        %p2394 = scmp.lt.s32.totalorder %s2393, 31
        %s2395 = scalar_select %p2394, %s2393, 31
        %s2396 = smul.addr %s2395, 8
        %s2397 = scalar_lea.vmem %s9, %s2396
      $region68: #{tpu_custom_call.1} parent=63 // pred_fallthru
        _
    $region64: #{tpu_custom_call.1} parent=5 // pred_fallthru
      _
  $region6: #{tpu_custom_call.1} parent=0 // loop_footer
    %s19 = sadd.s32 1, %s15
  $region7: #{tpu_custom_call.1} parent=0 // loop_footer_branch
    %14 = sbr.rel target = $region3
  $region8: #{tpu_custom_call.1} parent=0 // loop_exit
    _

</llo_original>
